<compile_context>
chip_gen: v7x
topology: tpu7x:2x2x1
jax: 0.10.0
libtpu: 0.0.40
codegen_flags: <defaults>
</compile_context>

<pallas_src>
import functools

import jax
import jax.numpy as jnp
from jax.experimental import pallas as pl
from jax.experimental.pallas import tpu as pltpu


def encoder_block_kernel(
    maskb_ref,                  # (TQ, TK) bf16 additive mask bias (0 / -1e20)
    qh_ref,                     # (1, H, TQ, D) bf16   query heads
    kh_ref,                     # (1, H, TK, D) bf16   key heads   (current KV tile)
    vh_ref,                     # (1, H, TK, D) bf16   value heads (current KV tile)
    qres_ref,                   # (1, TQ, E) bf16      residual stream (= query)
    wout_ref, bout_ref,         # (H, D, E) bf16, (1, E) f32
    g1_ref, beta1_ref,          # (1, E) f32
    w1_ref, b1_ref,             # (E, F) bf16, (1, F) f32
    w2_ref, b2_ref,             # (F, E) bf16, (1, E) f32
    g2_ref, beta2_ref,          # (1, E) f32
    out_ref,                    # (1, TQ, E)
    m_ref, l_ref, acc_ref,      # scratch: (H,TQ,1) f32, (H,TQ,1) f32, (H,TQ,D) f32
    *, scale, eps, heads,
):
    kv = pl.program_id(2)

    @pl.when(kv == 0)
    def _():
        m_ref[...] = jnp.full_like(m_ref, -jnp.inf)
        l_ref[...] = jnp.zeros_like(l_ref)
        acc_ref[...] = jnp.zeros_like(acc_ref)

    qh = qh_ref[0]              # (H, TQ, D) bf16
    kh = kh_ref[0]              # (H, TK, D) bf16
    vh = vh_ref[0]              # (H, TK, D) bf16
    bias = maskb_ref[...].astype(jnp.float32)                      # (TQ, TK)

    # --- attention for this KV tile: one batched-over-heads MXU contraction --
    s = jnp.einsum("hqd,hkd->hqk", qh, kh,
                   preferred_element_type=jnp.float32)             # (H, TQ, TK)
    # mask-then-scale, matching torch's masked_fill(-1e20) / sqrt(D)
    s = (s + bias[None, :, :]) * scale

    # online softmax (f32 running max / sum / weighted-V accumulator)
    # TODO(synk): bf16 exp would double EUP throughput on v6e/v7x; kept f32
    # here so the same kernel stays v5e-safe (no bf16 EUP on v5e).
    m_prev = m_ref[...]
    m_new = jnp.maximum(m_prev, jnp.max(s, axis=-1, keepdims=True))
    alpha = jnp.exp(m_prev - m_new)
    p = jnp.exp(s - m_new)
    l_ref[...] = alpha * l_ref[...] + jnp.sum(p, axis=-1, keepdims=True)
    acc_ref[...] = alpha * acc_ref[...] + jnp.einsum(
        "hqk,hkd->hqd", p.astype(vh.dtype), vh,
        preferred_element_type=jnp.float32)
    m_ref[...] = m_new

    # --- epilogue (fc_out + norms + FFN) only on the last KV tile ------------
    @pl.when(kv == pl.num_programs(2) - 1)
    def _():
        inv_l = pl.reciprocal(l_ref[...], approx=True)             # (H, TQ, 1)

        # fc_out folded per head WITHOUT an (H, TQ, E) intermediate:
        #   concat(heads) @ W_out == sum_h ctx_h @ W_out[h]
        def head_proj(h):
            ctx_h = (acc_ref[h] * inv_l[h]).astype(wout_ref.dtype)  # (TQ, D)
            return jnp.dot(ctx_h, wout_ref[h],
                           preferred_element_type=jnp.float32)      # (TQ, E)

        attn_out = head_proj(0)
        for h in range(1, heads):
            attn_out = attn_out + head_proj(h)
        attn_out = attn_out + bout_ref[...]                          # (TQ, E)

        def layer_norm(x, gamma, beta):
            mu = jnp.mean(x, axis=-1, keepdims=True)
            # one-pass variance, clamped: E[x^2]-mu^2 can go slightly negative
            var = jnp.maximum(
                jnp.mean(x * x, axis=-1, keepdims=True) - mu * mu, 0.0)
            return (x - mu) * jax.lax.rsqrt(var + eps) * gamma + beta

        # residual + norm1 (dropout == identity in eval mode)
        # TODO(synk): training-mode dropout (RNG mask) not implemented.
        x = layer_norm(attn_out + qres_ref[0].astype(jnp.float32),
                       g1_ref[...], beta1_ref[...])

        # feed-forward: Linear -> ReLU -> Linear (bf16 operands, f32 accumulate)
        h1 = jnp.dot(x.astype(w1_ref.dtype), w1_ref[...],
                     preferred_element_type=jnp.float32) + b1_ref[...]
        h1 = jnp.maximum(h1, 0.0).astype(w2_ref.dtype)  # keep (TQ,F) live in bf16
        ff = jnp.dot(h1, w2_ref[...],
                     preferred_element_type=jnp.float32) + b2_ref[...]

        # residual + norm2
        out = layer_norm(ff + x, g2_ref[...], beta2_ref[...])
        out_ref[0] = out.astype(out_ref.dtype)


def _round_up(x, m):
    return ((x + m - 1) // m) * m


def _vmem_info():
    """Returns (physical VMEM bytes per core, scoped limit to request)."""
    try:
        cap = int(pltpu.get_tpu_info().vmem_capacity_bytes)
    except Exception:                      # unknown generation / interpret mode
        cap = 64 * 1024 * 1024
    # leave headroom for Mosaic internal scratch: 3/4 of physical, <= 100 MiB
    limit = max(32 * 1024 * 1024, min(cap * 3 // 4, 100 * 1024 * 1024))
    return cap, limit


def transformer_encoder_block(value, key, query, mask, params, *, heads,
                              compute_dtype=jnp.bfloat16,
                              out_dtype=jnp.float32):
    N, S, E = query.shape
    assert E % heads == 0, "embed_size must be divisible by heads"
    D = E // heads
    assert mask.shape == (S, S)
    (wout, bout, g1, beta1, w1, b1, w2, b2, g2, beta2) = params
    F = w1.shape[1]

    vmem_cap, vmem_limit = _vmem_info()
    big_vmem = vmem_cap >= 96 * 1024 * 1024            # v5e / v6e (128 MiB/TC)

    # ---- tiling: 128-aligned padded fast path instead of one giant tile -----
    if S <= 128:
        S_pad = S                       # single tile; full-extent blocks legal
        TQ = TK = S
    else:
        S_pad = _round_up(S, 128)
        TQ = 256 if (big_vmem and S_pad % 256 == 0) else 128
        TK = (512 if (big_vmem and S_pad % 512 == 0) else
              256 if S_pad % 256 == 0 else 128)
    num_q, num_kv = S_pad // TQ, S_pad // TK

    if S_pad != S:
        pad = ((0, 0), (0, S_pad - S), (0, 0))
        query_p, key_p, value_p = (jnp.pad(a, pad) for a in (query, key, value))
        mask_p = jnp.pad(mask, ((0, S_pad - S), (0, S_pad - S)))   # pad = masked
    else:
        query_p, key_p, value_p, mask_p = query, key, value, mask

    # ---- wrapper-side layout plumbing (runs once, outside the kernel) -------
    def split_heads(x):    # (N, S_pad, E) -> (N, H, S_pad, D), bf16
        return x.reshape(N, S_pad, heads, D).transpose(0, 2, 1, 3).astype(compute_dtype)

    qh, kh, vh = split_heads(query_p), split_heads(key_p), split_heads(value_p)
    qres = query_p.astype(compute_dtype)                    # bf16 residual stream
    # additive mask bias in bf16 (compare+select hoisted out of the kernel)
    mask_bias = jnp.where(mask_p == 0, jnp.float32(-1e20),
                          jnp.float32(0.0)).astype(compute_dtype)
    # fc_out weight regrouped per head so the kernel avoids any relayout back
    wout_r = wout.reshape(heads, D, E).astype(compute_dtype)
    w1c, w2c = w1.astype(compute_dtype), w2.astype(compute_dtype)

    kernel = functools.partial(encoder_block_kernel,
                               scale=1.0 / (D ** 0.5), eps=1e-5, heads=heads)

    # constant-index param blocks -> single-buffered (index never changes, so
    # double-buffering only wastes VMEM; matters for w1/w2 on v7x's 64 MiB/TC).
    def param_spec(arr):
        zeros = (0,) * arr.ndim
        return pl.BlockSpec(arr.shape, lambda b, qi, ki: zeros,
                            pipeline_mode=pl.Buffered(1))

    seq_spec = pl.BlockSpec((1, TQ, E), lambda b, qi, ki: (b, qi, 0))

    grid_spec = pltpu.PrefetchScalarGridSpec(
        num_scalar_prefetch=0,
        grid=(N, num_q, num_kv),                     # KV reduction axis last
        in_specs=[
            pl.BlockSpec((TQ, TK), lambda b, qi, ki: (qi, ki)),                # mask
            pl.BlockSpec((1, heads, TQ, D), lambda b, qi, ki: (b, 0, qi, 0)),  # Q
            pl.BlockSpec((1, heads, TK, D), lambda b, qi, ki: (b, 0, ki, 0)),  # K
            pl.BlockSpec((1, heads, TK, D), lambda b, qi, ki: (b, 0, ki, 0)),  # V
            seq_spec,                                                          # resid
            param_spec(wout_r), param_spec(bout),
            param_spec(g1), param_spec(beta1),
            param_spec(w1c), param_spec(b1),
            param_spec(w2c), param_spec(b2),
            param_spec(g2), param_spec(beta2),
        ],
        out_specs=seq_spec,
        scratch_shapes=[
            pltpu.VMEM((heads, TQ, 1), jnp.float32),   # online-softmax running max
            pltpu.VMEM((heads, TQ, 1), jnp.float32),   # online-softmax running sum
            pltpu.VMEM((heads, TQ, D), jnp.float32),   # weighted-V accumulator
        ],
    )

    cost = pl.CostEstimate(
        flops=int(N * (4 * S_pad * S_pad * E + 2 * S_pad * E * E
                       + 4 * S_pad * E * F)),
        transcendentals=int(N * heads * S_pad * S_pad),
        bytes_accessed=int(4 * N * S_pad * E * 2 + S_pad * S_pad * 2
                           + (E * E + 2 * E * F) * 2 + (6 * E + F) * 4
                           + N * S_pad * E * jnp.dtype(out_dtype).itemsize),
    )

    # NOTE(v7x): both leading grid axes are "parallel" so the two TensorCores
    # can split (batch, q-tile) work even when N is small.
    out = pl.pallas_call(
        kernel,
        out_shape=jax.ShapeDtypeStruct((N, S_pad, E), out_dtype),
        grid_spec=grid_spec,
        compiler_params=pltpu.CompilerParams(
            dimension_semantics=("parallel", "parallel", "arbitrary"),
            vmem_limit_bytes=vmem_limit,
        ),
        cost_estimate=cost,
    )(mask_bias, qh, kh, vh, qres,
      wout_r, bout, g1, beta1, w1c, b1, w2c, b2, g2, beta2)

    return out[:, :S, :] if S_pad != S else out


def reference_forward(value, key, query, mask, params, *, heads):
    """Pure-JAX f32 re-implementation of the PyTorch forward (eval mode)."""
    (wout, bout, g1, beta1, w1, b1, w2, b2, g2, beta2) = params
    N, S, E = query.shape
    D = E // heads

    def split_heads(x):  # (N, S, E) -> (H, N, S, D)
        return x.reshape(N, S, heads, D).transpose(2, 0, 1, 3)

    qh, kh, vh = split_heads(query), split_heads(key), split_heads(value)
    energy = jnp.einsum("hnqd,hnkd->hnqk", qh, kh)
    energy = jnp.where(mask == 0, -1e20, energy)
    attn = jax.nn.softmax(energy / (D ** 0.5), axis=-1)
    out = jnp.einsum("hnqk,hnkd->hnqd", attn, vh)
    out = out.transpose(1, 2, 0, 3).reshape(N, S, E)
    out = out @ wout + bout

    def ln(x, g, b):
        mu = jnp.mean(x, -1, keepdims=True)
        var = jnp.mean((x - mu) ** 2, -1, keepdims=True)
        return (x - mu) * jax.lax.rsqrt(var + 1e-5) * g + b

    x = ln(out + query, g1, beta1)
    ff = jnp.maximum(x @ w1 + b1, 0.0) @ w2 + b2
    return ln(ff + x, g2, beta2)


if __name__ == "__main__":
    N, S, E = 2, 8, 32
    heads = 4
    forward_expansion = 4
    H_FF = forward_expansion * E

    root = jax.random.PRNGKey(0)
    ks = jax.random.split(root, 10)

    value = jax.random.normal(ks[0], (N, S, E), jnp.float32)
    key = jax.random.normal(ks[1], (N, S, E), jnp.float32)
    query = jax.random.normal(ks[2], (N, S, E), jnp.float32)
    # lower-triangular (causal-style) mask, broadcast over batch & heads
    mask = jnp.tril(jnp.ones((S, S), jnp.float32))

    init = lambda k, shape, scale=0.05: scale * jax.random.normal(k, shape, jnp.float32)
    params = (
        init(ks[3], (E, E)),                 # fc_out weight (in, out)
        init(ks[4], (1, E)),                 # fc_out bias
        jnp.ones((1, E), jnp.float32),       # norm1 gamma
        jnp.zeros((1, E), jnp.float32),      # norm1 beta
        init(ks[5], (E, H_FF)),              # ff W1
        init(ks[6], (1, H_FF)),              # ff b1
        init(ks[7], (H_FF, E)),              # ff W2
        init(ks[8], (1, E)),                 # ff b2
        jnp.ones((1, E), jnp.float32),       # norm2 gamma
        jnp.zeros((1, E), jnp.float32),      # norm2 beta
    )

    out = transformer_encoder_block(value, key, query, mask, params, heads=heads)
    out = jax.block_until_ready(out)

    ref = reference_forward(value, key, query, mask, params, heads=heads)
    assert out.shape == (N, S, E)
    # Kernel uses bf16 MXU operands / residual / mask bias (f32 accumulation)
    # plus approx reciprocal, so compare with a bf16-appropriate tolerance.
    assert jnp.allclose(out, ref, atol=5e-2, rtol=5e-2), "mismatch vs pure-JAX reference"

    print("KERNEL_OK")
</pallas_src>

<mosaic_0001>
module attributes {stable_mosaic.version = 11 : i64} {
  func.func @encoder_block_kernel(%arg0: i32, %arg1: i32, %arg2: i32, %arg3: memref<8x8xbf16, #tpu.memory_space<vmem>>, %arg4: memref<1x4x8x8xbf16, #tpu.memory_space<vmem>>, %arg5: memref<1x4x8x8xbf16, #tpu.memory_space<vmem>>, %arg6: memref<1x4x8x8xbf16, #tpu.memory_space<vmem>>, %arg7: memref<1x8x32xbf16, #tpu.memory_space<vmem>>, %arg8: memref<4x8x32xbf16, #tpu.memory_space<vmem>>, %arg9: memref<1x32xf32, #tpu.memory_space<vmem>>, %arg10: memref<1x32xf32, #tpu.memory_space<vmem>>, %arg11: memref<1x32xf32, #tpu.memory_space<vmem>>, %arg12: memref<32x128xbf16, #tpu.memory_space<vmem>>, %arg13: memref<1x128xf32, #tpu.memory_space<vmem>>, %arg14: memref<128x32xbf16, #tpu.memory_space<vmem>>, %arg15: memref<1x32xf32, #tpu.memory_space<vmem>>, %arg16: memref<1x32xf32, #tpu.memory_space<vmem>>, %arg17: memref<1x32xf32, #tpu.memory_space<vmem>>, %arg18: memref<1x8x32xf32, #tpu.memory_space<vmem>>, %arg19: memref<4x8x1xf32, #tpu.memory_space<vmem>>, %arg20: memref<4x8x1xf32, #tpu.memory_space<vmem>>, %arg21: memref<4x8x8xf32, #tpu.memory_space<vmem>>) attributes {dimension_semantics = [#tpu.dimension_semantics<parallel>, #tpu.dimension_semantics<parallel>, #tpu.dimension_semantics<arbitrary>], iteration_bounds = array<i64: 2, 1, 1>, scalar_prefetch = 0 : i64, scratch_operands = 3 : i64, tpu.core_type = #tpu.core_type<tc>, window_params = [{transform_indices = @transform_0, window_bounds = array<i64: 8, 8>}, {transform_indices = @transform_1, window_bounds = array<i64: 1, 4, 8, 8>}, {transform_indices = @transform_2, window_bounds = array<i64: 1, 4, 8, 8>}, {transform_indices = @transform_3, window_bounds = array<i64: 1, 4, 8, 8>}, {transform_indices = @transform_4, window_bounds = array<i64: 1, 8, 32>}, {pipeline_mode = #tpu.pipeline_mode<synchronous>, transform_indices = @transform_5, window_bounds = array<i64: 4, 8, 32>}, {pipeline_mode = #tpu.pipeline_mode<synchronous>, transform_indices = @transform_6, window_bounds = array<i64: 1, 32>}, {pipeline_mode = #tpu.pipeline_mode<synchronous>, transform_indices = @transform_7, window_bounds = array<i64: 1, 32>}, {pipeline_mode = #tpu.pipeline_mode<synchronous>, transform_indices = @transform_8, window_bounds = array<i64: 1, 32>}, {pipeline_mode = #tpu.pipeline_mode<synchronous>, transform_indices = @transform_9, window_bounds = array<i64: 32, 128>}, {pipeline_mode = #tpu.pipeline_mode<synchronous>, transform_indices = @transform_10, window_bounds = array<i64: 1, 128>}, {pipeline_mode = #tpu.pipeline_mode<synchronous>, transform_indices = @transform_11, window_bounds = array<i64: 128, 32>}, {pipeline_mode = #tpu.pipeline_mode<synchronous>, transform_indices = @transform_12, window_bounds = array<i64: 1, 32>}, {pipeline_mode = #tpu.pipeline_mode<synchronous>, transform_indices = @transform_13, window_bounds = array<i64: 1, 32>}, {pipeline_mode = #tpu.pipeline_mode<synchronous>, transform_indices = @transform_14, window_bounds = array<i64: 1, 32>}, {transform_indices = @transform_15, window_bounds = array<i64: 1, 8, 32>}]} {
    %c0_i32 = arith.constant 0 : i32
    %0 = arith.cmpi eq, %arg2, %c0_i32 : i32
    %1 = arith.extui %0 : i1 to i32
    %c0_i32_0 = arith.constant 0 : i32
    %2 = arith.cmpi ne, %1, %c0_i32_0 : i32
    scf.if %2 {
      %cst_38 = arith.constant 0xFF800000 : f32
      %43 = vector.broadcast %cst_38 : f32 to vector<4x8x1xf32>
      %c0_39 = arith.constant 0 : index
      %c0_40 = arith.constant 0 : index
      %c0_41 = arith.constant 0 : index
      %44 = vector.load %arg19[%c0_39, %c0_40, %c0_41] : memref<4x8x1xf32, #tpu.memory_space<vmem>>, vector<4x8x1xf32>
      tpu.vector_store %arg19[%c0_39, %c0_40, %c0_41], %43 {strides = array<i32>} : memref<4x8x1xf32, #tpu.memory_space<vmem>>, vector<4x8x1xf32>,
      %cst_42 = arith.constant 0.000000e+00 : f32
      %45 = vector.broadcast %cst_42 : f32 to vector<4x8x1xf32>
      %c0_43 = arith.constant 0 : index
      %c0_44 = arith.constant 0 : index
      %c0_45 = arith.constant 0 : index
      %46 = vector.load %arg20[%c0_43, %c0_44, %c0_45] : memref<4x8x1xf32, #tpu.memory_space<vmem>>, vector<4x8x1xf32>
      tpu.vector_store %arg20[%c0_43, %c0_44, %c0_45], %45 {strides = array<i32>} : memref<4x8x1xf32, #tpu.memory_space<vmem>>, vector<4x8x1xf32>,
      %cst_46 = arith.constant 0.000000e+00 : f32
      %47 = vector.broadcast %cst_46 : f32 to vector<4x8x8xf32>
      %c0_47 = arith.constant 0 : index
      %c0_48 = arith.constant 0 : index
      %c0_49 = arith.constant 0 : index
      %48 = vector.load %arg21[%c0_47, %c0_48, %c0_49] : memref<4x8x8xf32, #tpu.memory_space<vmem>>, vector<4x8x8xf32>
      tpu.vector_store %arg21[%c0_47, %c0_48, %c0_49], %47 {strides = array<i32>} : memref<4x8x8xf32, #tpu.memory_space<vmem>>, vector<4x8x8xf32>,
    } else {
    }
    %c0 = arith.constant 0 : index
    %c0_1 = arith.constant 0 : index
    %c0_2 = arith.constant 0 : index
    %c0_3 = arith.constant 0 : index
    %3 = vector.load %arg4[%c0, %c0_1, %c0_2, %c0_3] : memref<1x4x8x8xbf16, #tpu.memory_space<vmem>>, vector<1x4x8x8xbf16>
    %4 = vector.shape_cast %3 : vector<1x4x8x8xbf16> to vector<4x8x8xbf16>
    %c0_4 = arith.constant 0 : index
    %c0_5 = arith.constant 0 : index
    %c0_6 = arith.constant 0 : index
    %c0_7 = arith.constant 0 : index
    %5 = vector.load %arg5[%c0_4, %c0_5, %c0_6, %c0_7] : memref<1x4x8x8xbf16, #tpu.memory_space<vmem>>, vector<1x4x8x8xbf16>
    %6 = vector.shape_cast %5 : vector<1x4x8x8xbf16> to vector<4x8x8xbf16>
    %c0_8 = arith.constant 0 : index
    %c0_9 = arith.constant 0 : index
    %c0_10 = arith.constant 0 : index
    %c0_11 = arith.constant 0 : index
    %7 = vector.load %arg6[%c0_8, %c0_9, %c0_10, %c0_11] : memref<1x4x8x8xbf16, #tpu.memory_space<vmem>>, vector<1x4x8x8xbf16>
    %8 = vector.shape_cast %7 : vector<1x4x8x8xbf16> to vector<4x8x8xbf16>
    %c0_12 = arith.constant 0 : index
    %c0_13 = arith.constant 0 : index
    %9 = vector.load %arg3[%c0_12, %c0_13] : memref<8x8xbf16, #tpu.memory_space<vmem>>, vector<8x8xbf16>
    %10 = arith.extf %9 : vector<8x8xbf16> to vector<8x8xf32>
    "tpu.trace_start"() <{level = 10 : i32, message = "hqd,hkd->hqk"}> : () -> ()
    %cst = arith.constant dense<0.000000e+00> : vector<4x8x8xf32>
    %11 = tpu.matmul %4, %6, %cst {dimension_numbers = #tpu.dot_dimension_numbers<[2], [2], [1], [1], [0, 0, 0, 1, 1, 1], [0], [0]>} : vector<4x8x8xbf16>, vector<4x8x8xbf16>, vector<4x8x8xf32> -> vector<4x8x8xf32>
    "tpu.trace_stop"() : () -> ()
    %12 = vector.shape_cast %10 : vector<8x8xf32> to vector<1x8x8xf32>
    %13 = vector.broadcast %12 : vector<1x8x8xf32> to vector<4x8x8xf32>
    %14 = arith.addf %11, %13 : vector<4x8x8xf32>
    %cst_14 = arith.constant 0.353553385 : f32
    %15 = vector.broadcast %cst_14 : f32 to vector<4x8x8xf32>
    %16 = arith.mulf %14, %15 : vector<4x8x8xf32>
    %c0_15 = arith.constant 0 : index
    %c0_16 = arith.constant 0 : index
    %c0_17 = arith.constant 0 : index
    %17 = vector.load %arg19[%c0_15, %c0_16, %c0_17] : memref<4x8x1xf32, #tpu.memory_space<vmem>>, vector<4x8x1xf32>
    %cst_18 = arith.constant dense<0xFF800000> : vector<4x8xf32>
    %18 = vector.multi_reduction <maximumf>, %16, %cst_18 [2] : vector<4x8x8xf32> to vector<4x8xf32>
    %19 = vector.shape_cast %18 : vector<4x8xf32> to vector<4x8x1xf32>
    %20 = arith.maximumf %17, %19 : vector<4x8x1xf32>
    %21 = arith.subf %17, %20 : vector<4x8x1xf32>
    %22 = math.exp %21 : vector<4x8x1xf32>
    %23 = vector.broadcast %20 : vector<4x8x1xf32> to vector<4x8x8xf32>
    %24 = arith.subf %16, %23 : vector<4x8x8xf32>
    %25 = math.exp %24 : vector<4x8x8xf32>
    %c0_19 = arith.constant 0 : index
    %c0_20 = arith.constant 0 : index
    %c0_21 = arith.constant 0 : index
    %26 = vector.load %arg20[%c0_19, %c0_20, %c0_21] : memref<4x8x1xf32, #tpu.memory_space<vmem>>, vector<4x8x1xf32>
    %27 = arith.mulf %22, %26 : vector<4x8x1xf32>
    %cst_22 = arith.constant dense<0.000000e+00> : vector<4x8xf32>
    %28 = vector.multi_reduction <add>, %25, %cst_22 [2] : vector<4x8x8xf32> to vector<4x8xf32>
    %29 = vector.shape_cast %28 : vector<4x8xf32> to vector<4x8x1xf32>
    %30 = arith.addf %27, %29 : vector<4x8x1xf32>
    %c0_23 = arith.constant 0 : index
    %c0_24 = arith.constant 0 : index
    %c0_25 = arith.constant 0 : index
    %31 = vector.load %arg20[%c0_23, %c0_24, %c0_25] : memref<4x8x1xf32, #tpu.memory_space<vmem>>, vector<4x8x1xf32>
    tpu.vector_store %arg20[%c0_23, %c0_24, %c0_25], %30 {strides = array<i32>} : memref<4x8x1xf32, #tpu.memory_space<vmem>>, vector<4x8x1xf32>,
    %c0_26 = arith.constant 0 : index
    %c0_27 = arith.constant 0 : index
    %c0_28 = arith.constant 0 : index
    %32 = vector.load %arg21[%c0_26, %c0_27, %c0_28] : memref<4x8x8xf32, #tpu.memory_space<vmem>>, vector<4x8x8xf32>
    %33 = vector.broadcast %22 : vector<4x8x1xf32> to vector<4x8x8xf32>
    %34 = arith.mulf %33, %32 : vector<4x8x8xf32>
    %35 = arith.truncf %25 : vector<4x8x8xf32> to vector<4x8x8xbf16>
    "tpu.trace_start"() <{level = 10 : i32, message = "hqk,hkd->hqd"}> : () -> ()
    %cst_29 = arith.constant dense<0.000000e+00> : vector<4x8x8xf32>
    %36 = tpu.matmul %35, %8, %cst_29 {dimension_numbers = #tpu.dot_dimension_numbers<[2], [1], [1], [2], [0, 0, 0, 1, 1, 2], [0], [0]>} : vector<4x8x8xbf16>, vector<4x8x8xbf16>, vector<4x8x8xf32> -> vector<4x8x8xf32>
    "tpu.trace_stop"() : () -> ()
    %37 = arith.addf %34, %36 : vector<4x8x8xf32>
    %c0_30 = arith.constant 0 : index
    %c0_31 = arith.constant 0 : index
    %c0_32 = arith.constant 0 : index
    %38 = vector.load %arg21[%c0_30, %c0_31, %c0_32] : memref<4x8x8xf32, #tpu.memory_space<vmem>>, vector<4x8x8xf32>
    tpu.vector_store %arg21[%c0_30, %c0_31, %c0_32], %37 {strides = array<i32>} : memref<4x8x8xf32, #tpu.memory_space<vmem>>, vector<4x8x8xf32>,
    %c0_33 = arith.constant 0 : index
    %c0_34 = arith.constant 0 : index
    %c0_35 = arith.constant 0 : index
    %39 = vector.load %arg19[%c0_33, %c0_34, %c0_35] : memref<4x8x1xf32, #tpu.memory_space<vmem>>, vector<4x8x1xf32>
    tpu.vector_store %arg19[%c0_33, %c0_34, %c0_35], %20 {strides = array<i32>} : memref<4x8x1xf32, #tpu.memory_space<vmem>>, vector<4x8x1xf32>,
    %c0_i32_36 = arith.constant 0 : i32
    %40 = arith.cmpi eq, %arg2, %c0_i32_36 : i32
    %41 = arith.extui %40 : i1 to i32
    %c0_i32_37 = arith.constant 0 : i32
    %42 = arith.cmpi ne, %41, %c0_i32_37 : i32
    scf.if %42 {
      %c0_38 = arith.constant 0 : index
      %c0_39 = arith.constant 0 : index
      %c0_40 = arith.constant 0 : index
      %43 = vector.load %arg20[%c0_38, %c0_39, %c0_40] : memref<4x8x1xf32, #tpu.memory_space<vmem>>, vector<4x8x1xf32>
      %44 = tpu.reciprocal %43 {approx = true} : vector<4x8x1xf32> -> vector<4x8x1xf32>
      %c0_41 = arith.constant 0 : index
      %c0_42 = arith.constant 0 : index
      %c0_43 = arith.constant 0 : index
      %45 = vector.load %arg21[%c0_41, %c0_42, %c0_43] : memref<4x8x8xf32, #tpu.memory_space<vmem>>, vector<1x8x8xf32>
      %46 = vector.shape_cast %45 : vector<1x8x8xf32> to vector<8x8xf32>
      %47 = vector.extract_strided_slice %44 {offsets = [0, 0, 0], sizes = [1, 8, 1], strides = [1, 1, 1]} : vector<4x8x1xf32> to vector<1x8x1xf32>
      %48 = vector.shape_cast %47 : vector<1x8x1xf32> to vector<8x1xf32>
      %49 = vector.broadcast %48 : vector<8x1xf32> to vector<8x8xf32>
      %50 = arith.mulf %46, %49 : vector<8x8xf32>
      %51 = arith.truncf %50 : vector<8x8xf32> to vector<8x8xbf16>
      %c0_44 = arith.constant 0 : index
      %c0_45 = arith.constant 0 : index
      %c0_46 = arith.constant 0 : index
      %52 = vector.load %arg8[%c0_44, %c0_45, %c0_46] : memref<4x8x32xbf16, #tpu.memory_space<vmem>>, vector<1x8x32xbf16>
      %53 = vector.shape_cast %52 : vector<1x8x32xbf16> to vector<8x32xbf16>
      %cst_47 = arith.constant dense<0.000000e+00> : vector<8x32xf32>
      %54 = tpu.matmul %51, %53, %cst_47 {dimension_numbers = #tpu.dot_dimension_numbers<[1], [0], [0], [1], [0, 0, 1, 1], [], []>} : vector<8x8xbf16>, vector<8x32xbf16>, vector<8x32xf32> -> vector<8x32xf32>
      %c1 = arith.constant 1 : index
      %c0_48 = arith.constant 0 : index
      %c0_49 = arith.constant 0 : index
      %55 = vector.load %arg21[%c1, %c0_48, %c0_49] : memref<4x8x8xf32, #tpu.memory_space<vmem>>, vector<1x8x8xf32>
      %56 = vector.shape_cast %55 : vector<1x8x8xf32> to vector<8x8xf32>
      %57 = vector.extract_strided_slice %44 {offsets = [1, 0, 0], sizes = [1, 8, 1], strides = [1, 1, 1]} : vector<4x8x1xf32> to vector<1x8x1xf32>
      %58 = vector.shape_cast %57 : vector<1x8x1xf32> to vector<8x1xf32>
      %59 = vector.broadcast %58 : vector<8x1xf32> to vector<8x8xf32>
      %60 = arith.mulf %56, %59 : vector<8x8xf32>
      %61 = arith.truncf %60 : vector<8x8xf32> to vector<8x8xbf16>
      %c1_50 = arith.constant 1 : index
      %c0_51 = arith.constant 0 : index
      %c0_52 = arith.constant 0 : index
      %62 = vector.load %arg8[%c1_50, %c0_51, %c0_52] : memref<4x8x32xbf16, #tpu.memory_space<vmem>>, vector<1x8x32xbf16>
      %63 = vector.shape_cast %62 : vector<1x8x32xbf16> to vector<8x32xbf16>
      %cst_53 = arith.constant dense<0.000000e+00> : vector<8x32xf32>
      %64 = tpu.matmul %61, %63, %cst_53 {dimension_numbers = #tpu.dot_dimension_numbers<[1], [0], [0], [1], [0, 0, 1, 1], [], []>} : vector<8x8xbf16>, vector<8x32xbf16>, vector<8x32xf32> -> vector<8x32xf32>
      %65 = arith.addf %54, %64 : vector<8x32xf32>
      %c2 = arith.constant 2 : index
      %c0_54 = arith.constant 0 : index
      %c0_55 = arith.constant 0 : index
      %66 = vector.load %arg21[%c2, %c0_54, %c0_55] : memref<4x8x8xf32, #tpu.memory_space<vmem>>, vector<1x8x8xf32>
      %67 = vector.shape_cast %66 : vector<1x8x8xf32> to vector<8x8xf32>
      %68 = vector.extract_strided_slice %44 {offsets = [2, 0, 0], sizes = [1, 8, 1], strides = [1, 1, 1]} : vector<4x8x1xf32> to vector<1x8x1xf32>
      %69 = vector.shape_cast %68 : vector<1x8x1xf32> to vector<8x1xf32>
      %70 = vector.broadcast %69 : vector<8x1xf32> to vector<8x8xf32>
      %71 = arith.mulf %67, %70 : vector<8x8xf32>
      %72 = arith.truncf %71 : vector<8x8xf32> to vector<8x8xbf16>
      %c2_56 = arith.constant 2 : index
      %c0_57 = arith.constant 0 : index
      %c0_58 = arith.constant 0 : index
      %73 = vector.load %arg8[%c2_56, %c0_57, %c0_58] : memref<4x8x32xbf16, #tpu.memory_space<vmem>>, vector<1x8x32xbf16>
      %74 = vector.shape_cast %73 : vector<1x8x32xbf16> to vector<8x32xbf16>
      %cst_59 = arith.constant dense<0.000000e+00> : vector<8x32xf32>
      %75 = tpu.matmul %72, %74, %cst_59 {dimension_numbers = #tpu.dot_dimension_numbers<[1], [0], [0], [1], [0, 0, 1, 1], [], []>} : vector<8x8xbf16>, vector<8x32xbf16>, vector<8x32xf32> -> vector<8x32xf32>
      %76 = arith.addf %65, %75 : vector<8x32xf32>
      %c3 = arith.constant 3 : index
      %c0_60 = arith.constant 0 : index
      %c0_61 = arith.constant 0 : index
      %77 = vector.load %arg21[%c3, %c0_60, %c0_61] : memref<4x8x8xf32, #tpu.memory_space<vmem>>, vector<1x8x8xf32>
      %78 = vector.shape_cast %77 : vector<1x8x8xf32> to vector<8x8xf32>
      %79 = vector.extract_strided_slice %44 {offsets = [3, 0, 0], sizes = [1, 8, 1], strides = [1, 1, 1]} : vector<4x8x1xf32> to vector<1x8x1xf32>
      %80 = vector.shape_cast %79 : vector<1x8x1xf32> to vector<8x1xf32>
      %81 = vector.broadcast %80 : vector<8x1xf32> to vector<8x8xf32>
      %82 = arith.mulf %78, %81 : vector<8x8xf32>
      %83 = arith.truncf %82 : vector<8x8xf32> to vector<8x8xbf16>
      %c3_62 = arith.constant 3 : index
      %c0_63 = arith.constant 0 : index
      %c0_64 = arith.constant 0 : index
      %84 = vector.load %arg8[%c3_62, %c0_63, %c0_64] : memref<4x8x32xbf16, #tpu.memory_space<vmem>>, vector<1x8x32xbf16>
      %85 = vector.shape_cast %84 : vector<1x8x32xbf16> to vector<8x32xbf16>
      %cst_65 = arith.constant dense<0.000000e+00> : vector<8x32xf32>
      %86 = tpu.matmul %83, %85, %cst_65 {dimension_numbers = #tpu.dot_dimension_numbers<[1], [0], [0], [1], [0, 0, 1, 1], [], []>} : vector<8x8xbf16>, vector<8x32xbf16>, vector<8x32xf32> -> vector<8x32xf32>
      %87 = arith.addf %76, %86 : vector<8x32xf32>
      %c0_66 = arith.constant 0 : index
      %c0_67 = arith.constant 0 : index
      %88 = vector.load %arg9[%c0_66, %c0_67] : memref<1x32xf32, #tpu.memory_space<vmem>>, vector<1x32xf32>
      %89 = vector.broadcast %88 : vector<1x32xf32> to vector<8x32xf32>
      %90 = arith.addf %87, %89 : vector<8x32xf32>
      %c0_68 = arith.constant 0 : index
      %c0_69 = arith.constant 0 : index
      %c0_70 = arith.constant 0 : index
      %91 = vector.load %arg7[%c0_68, %c0_69, %c0_70] : memref<1x8x32xbf16, #tpu.memory_space<vmem>>, vector<1x8x32xbf16>
      %92 = vector.shape_cast %91 : vector<1x8x32xbf16> to vector<8x32xbf16>
      %93 = arith.extf %92 : vector<8x32xbf16> to vector<8x32xf32>
      %94 = arith.addf %90, %93 : vector<8x32xf32>
      %c0_71 = arith.constant 0 : index
      %c0_72 = arith.constant 0 : index
      %95 = vector.load %arg10[%c0_71, %c0_72] : memref<1x32xf32, #tpu.memory_space<vmem>>, vector<1x32xf32>
      %c0_73 = arith.constant 0 : index
      %c0_74 = arith.constant 0 : index
      %96 = vector.load %arg11[%c0_73, %c0_74] : memref<1x32xf32, #tpu.memory_space<vmem>>, vector<1x32xf32>
      %cst_75 = arith.constant dense<0.000000e+00> : vector<8xf32>
      %97 = vector.multi_reduction <add>, %94, %cst_75 [1] : vector<8x32xf32> to vector<8xf32>
      %98 = vector.shape_cast %97 : vector<8xf32> to vector<8x1xf32>
      %cst_76 = arith.constant 3.200000e+01 : f32
      %99 = vector.broadcast %cst_76 : f32 to vector<8x1xf32>
      %100 = arith.divf %98, %99 : vector<8x1xf32>
      %101 = arith.mulf %94, %94 : vector<8x32xf32>
      %cst_77 = arith.constant dense<0.000000e+00> : vector<8xf32>
      %102 = vector.multi_reduction <add>, %101, %cst_77 [1] : vector<8x32xf32> to vector<8xf32>
      %103 = vector.shape_cast %102 : vector<8xf32> to vector<8x1xf32>
      %cst_78 = arith.constant 3.200000e+01 : f32
      %104 = vector.broadcast %cst_78 : f32 to vector<8x1xf32>
      %105 = arith.divf %103, %104 : vector<8x1xf32>
      %106 = arith.mulf %100, %100 : vector<8x1xf32>
      %107 = arith.subf %105, %106 : vector<8x1xf32>
      %cst_79 = arith.constant 0.000000e+00 : f32
      %108 = vector.broadcast %cst_79 : f32 to vector<8x1xf32>
      %109 = arith.maximumf %107, %108 : vector<8x1xf32>
      %110 = vector.broadcast %100 : vector<8x1xf32> to vector<8x32xf32>
      %111 = arith.subf %94, %110 : vector<8x32xf32>
      %cst_80 = arith.constant 9.99999974E-6 : f32
      %112 = vector.broadcast %cst_80 : f32 to vector<8x1xf32>
      %113 = arith.addf %109, %112 : vector<8x1xf32>
      %114 = math.rsqrt %113 : vector<8x1xf32>
      %115 = vector.broadcast %114 : vector<8x1xf32> to vector<8x32xf32>
      %116 = arith.mulf %111, %115 : vector<8x32xf32>
      %117 = vector.broadcast %95 : vector<1x32xf32> to vector<8x32xf32>
      %118 = arith.mulf %116, %117 : vector<8x32xf32>
      %119 = vector.broadcast %96 : vector<1x32xf32> to vector<8x32xf32>
      %120 = arith.addf %118, %119 : vector<8x32xf32>
      %121 = arith.truncf %120 : vector<8x32xf32> to vector<8x32xbf16>
      %c0_81 = arith.constant 0 : index
      %c0_82 = arith.constant 0 : index
      %122 = vector.load %arg12[%c0_81, %c0_82] : memref<32x128xbf16, #tpu.memory_space<vmem>>, vector<32x128xbf16>
      %cst_83 = arith.constant dense<0.000000e+00> : vector<8x128xf32>
      %123 = tpu.matmul %121, %122, %cst_83 {dimension_numbers = #tpu.dot_dimension_numbers<[1], [0], [0], [1], [0, 0, 1, 1], [], []>} : vector<8x32xbf16>, vector<32x128xbf16>, vector<8x128xf32> -> vector<8x128xf32>
      %c0_84 = arith.constant 0 : index
      %c0_85 = arith.constant 0 : index
      %124 = vector.load %arg13[%c0_84, %c0_85] : memref<1x128xf32, #tpu.memory_space<vmem>>, vector<1x128xf32>
      %125 = vector.broadcast %124 : vector<1x128xf32> to vector<8x128xf32>
      %126 = arith.addf %123, %125 : vector<8x128xf32>
      %cst_86 = arith.constant 0.000000e+00 : f32
      %127 = vector.broadcast %cst_86 : f32 to vector<8x128xf32>
      %128 = arith.maximumf %126, %127 : vector<8x128xf32>
      %129 = arith.truncf %128 : vector<8x128xf32> to vector<8x128xbf16>
      %c0_87 = arith.constant 0 : index
      %c0_88 = arith.constant 0 : index
      %130 = vector.load %arg14[%c0_87, %c0_88] : memref<128x32xbf16, #tpu.memory_space<vmem>>, vector<128x32xbf16>
      %cst_89 = arith.constant dense<0.000000e+00> : vector<8x32xf32>
      %131 = tpu.matmul %129, %130, %cst_89 {dimension_numbers = #tpu.dot_dimension_numbers<[1], [0], [0], [1], [0, 0, 1, 1], [], []>} : vector<8x128xbf16>, vector<128x32xbf16>, vector<8x32xf32> -> vector<8x32xf32>
      %c0_90 = arith.constant 0 : index
      %c0_91 = arith.constant 0 : index
      %132 = vector.load %arg15[%c0_90, %c0_91] : memref<1x32xf32, #tpu.memory_space<vmem>>, vector<1x32xf32>
      %133 = vector.broadcast %132 : vector<1x32xf32> to vector<8x32xf32>
      %134 = arith.addf %131, %133 : vector<8x32xf32>
      %135 = arith.addf %134, %120 : vector<8x32xf32>
      %c0_92 = arith.constant 0 : index
      %c0_93 = arith.constant 0 : index
      %136 = vector.load %arg16[%c0_92, %c0_93] : memref<1x32xf32, #tpu.memory_space<vmem>>, vector<1x32xf32>
      %c0_94 = arith.constant 0 : index
      %c0_95 = arith.constant 0 : index
      %137 = vector.load %arg17[%c0_94, %c0_95] : memref<1x32xf32, #tpu.memory_space<vmem>>, vector<1x32xf32>
      %cst_96 = arith.constant dense<0.000000e+00> : vector<8xf32>
      %138 = vector.multi_reduction <add>, %135, %cst_96 [1] : vector<8x32xf32> to vector<8xf32>
      %139 = vector.shape_cast %138 : vector<8xf32> to vector<8x1xf32>
      %cst_97 = arith.constant 3.200000e+01 : f32
      %140 = vector.broadcast %cst_97 : f32 to vector<8x1xf32>
      %141 = arith.divf %139, %140 : vector<8x1xf32>
      %142 = arith.mulf %135, %135 : vector<8x32xf32>
      %cst_98 = arith.constant dense<0.000000e+00> : vector<8xf32>
      %143 = vector.multi_reduction <add>, %142, %cst_98 [1] : vector<8x32xf32> to vector<8xf32>
      %144 = vector.shape_cast %143 : vector<8xf32> to vector<8x1xf32>
      %cst_99 = arith.constant 3.200000e+01 : f32
      %145 = vector.broadcast %cst_99 : f32 to vector<8x1xf32>
      %146 = arith.divf %144, %145 : vector<8x1xf32>
      %147 = arith.mulf %141, %141 : vector<8x1xf32>
      %148 = arith.subf %146, %147 : vector<8x1xf32>
      %cst_100 = arith.constant 0.000000e+00 : f32
      %149 = vector.broadcast %cst_100 : f32 to vector<8x1xf32>
      %150 = arith.maximumf %148, %149 : vector<8x1xf32>
      %151 = vector.broadcast %141 : vector<8x1xf32> to vector<8x32xf32>
      %152 = arith.subf %135, %151 : vector<8x32xf32>
      %cst_101 = arith.constant 9.99999974E-6 : f32
      %153 = vector.broadcast %cst_101 : f32 to vector<8x1xf32>
      %154 = arith.addf %150, %153 : vector<8x1xf32>
      %155 = math.rsqrt %154 : vector<8x1xf32>
      %156 = vector.broadcast %155 : vector<8x1xf32> to vector<8x32xf32>
      %157 = arith.mulf %152, %156 : vector<8x32xf32>
      %158 = vector.broadcast %136 : vector<1x32xf32> to vector<8x32xf32>
      %159 = arith.mulf %157, %158 : vector<8x32xf32>
      %160 = vector.broadcast %137 : vector<1x32xf32> to vector<8x32xf32>
      %161 = arith.addf %159, %160 : vector<8x32xf32>
      %c0_102 = arith.constant 0 : index
      %c0_103 = arith.constant 0 : index
      %c0_104 = arith.constant 0 : index
      %162 = vector.load %arg18[%c0_102, %c0_103, %c0_104] : memref<1x8x32xf32, #tpu.memory_space<vmem>>, vector<1x8x32xf32>
      %163 = vector.shape_cast %162 : vector<1x8x32xf32> to vector<8x32xf32>
      %164 = vector.shape_cast %161 : vector<8x32xf32> to vector<1x8x32xf32>
      tpu.vector_store %arg18[%c0_102, %c0_103, %c0_104], %164 {strides = array<i32>} : memref<1x8x32xf32, #tpu.memory_space<vmem>>, vector<1x8x32xf32>,
    } else {
    }
    return
  }
  func.func @transform_0(%arg0: i32, %arg1: i32, %arg2: i32) -> (i32, i32) {
    %c0_i32 = arith.constant 0 : i32
    return %arg1, %arg2 : i32, i32
  }
  func.func @transform_1(%arg0: i32, %arg1: i32, %arg2: i32) -> (i32, i32, i32, i32) {
    %c0_i32 = arith.constant 0 : i32
    %c0_i32_0 = arith.constant 0 : i32
    %c0_i32_1 = arith.constant 0 : i32
    return %arg0, %c0_i32, %arg1, %c0_i32_0 : i32, i32, i32, i32
  }
  func.func @transform_2(%arg0: i32, %arg1: i32, %arg2: i32) -> (i32, i32, i32, i32) {
    %c0_i32 = arith.constant 0 : i32
    %c0_i32_0 = arith.constant 0 : i32
    %c0_i32_1 = arith.constant 0 : i32
    return %arg0, %c0_i32, %arg2, %c0_i32_0 : i32, i32, i32, i32
  }
  func.func @transform_3(%arg0: i32, %arg1: i32, %arg2: i32) -> (i32, i32, i32, i32) {
    %c0_i32 = arith.constant 0 : i32
    %c0_i32_0 = arith.constant 0 : i32
    %c0_i32_1 = arith.constant 0 : i32
    return %arg0, %c0_i32, %arg2, %c0_i32_0 : i32, i32, i32, i32
  }
  func.func @transform_4(%arg0: i32, %arg1: i32, %arg2: i32) -> (i32, i32, i32) {
    %c0_i32 = arith.constant 0 : i32
    %c0_i32_0 = arith.constant 0 : i32
    return %arg0, %arg1, %c0_i32 : i32, i32, i32
  }
  func.func @transform_5(%arg0: i32, %arg1: i32, %arg2: i32) -> (i32, i32, i32) {
    %c0_i32 = arith.constant 0 : i32
    %c0_i32_0 = arith.constant 0 : i32
    %c0_i32_1 = arith.constant 0 : i32
    %c0_i32_2 = arith.constant 0 : i32
    return %c0_i32, %c0_i32_0, %c0_i32_1 : i32, i32, i32
  }
  func.func @transform_6(%arg0: i32, %arg1: i32, %arg2: i32) -> (i32, i32) {
    %c0_i32 = arith.constant 0 : i32
    %c0_i32_0 = arith.constant 0 : i32
    %c0_i32_1 = arith.constant 0 : i32
    return %c0_i32, %c0_i32_0 : i32, i32
  }
  func.func @transform_7(%arg0: i32, %arg1: i32, %arg2: i32) -> (i32, i32) {
    %c0_i32 = arith.constant 0 : i32
    %c0_i32_0 = arith.constant 0 : i32
    %c0_i32_1 = arith.constant 0 : i32
    return %c0_i32, %c0_i32_0 : i32, i32
  }
  func.func @transform_8(%arg0: i32, %arg1: i32, %arg2: i32) -> (i32, i32) {
    %c0_i32 = arith.constant 0 : i32
    %c0_i32_0 = arith.constant 0 : i32
    %c0_i32_1 = arith.constant 0 : i32
    return %c0_i32, %c0_i32_0 : i32, i32
  }
  func.func @transform_9(%arg0: i32, %arg1: i32, %arg2: i32) -> (i32, i32) {
    %c0_i32 = arith.constant 0 : i32
    %c0_i32_0 = arith.constant 0 : i32
    %c0_i32_1 = arith.constant 0 : i32
    return %c0_i32, %c0_i32_0 : i32, i32
  }
  func.func @transform_10(%arg0: i32, %arg1: i32, %arg2: i32) -> (i32, i32) {
    %c0_i32 = arith.constant 0 : i32
    %c0_i32_0 = arith.constant 0 : i32
    %c0_i32_1 = arith.constant 0 : i32
    return %c0_i32, %c0_i32_0 : i32, i32
  }
  func.func @transform_11(%arg0: i32, %arg1: i32, %arg2: i32) -> (i32, i32) {
    %c0_i32 = arith.constant 0 : i32
    %c0_i32_0 = arith.constant 0 : i32
    %c0_i32_1 = arith.constant 0 : i32
    return %c0_i32, %c0_i32_0 : i32, i32
  }
  func.func @transform_12(%arg0: i32, %arg1: i32, %arg2: i32) -> (i32, i32) {
    %c0_i32 = arith.constant 0 : i32
    %c0_i32_0 = arith.constant 0 : i32
    %c0_i32_1 = arith.constant 0 : i32
    return %c0_i32, %c0_i32_0 : i32, i32
  }
  func.func @transform_13(%arg0: i32, %arg1: i32, %arg2: i32) -> (i32, i32) {
    %c0_i32 = arith.constant 0 : i32
    %c0_i32_0 = arith.constant 0 : i32
    %c0_i32_1 = arith.constant 0 : i32
    return %c0_i32, %c0_i32_0 : i32, i32
  }
  func.func @transform_14(%arg0: i32, %arg1: i32, %arg2: i32) -> (i32, i32) {
    %c0_i32 = arith.constant 0 : i32
    %c0_i32_0 = arith.constant 0 : i32
    %c0_i32_1 = arith.constant 0 : i32
    return %c0_i32, %c0_i32_0 : i32, i32
  }
  func.func @transform_15(%arg0: i32, %arg1: i32, %arg2: i32) -> (i32, i32, i32) {
    %c0_i32 = arith.constant 0 : i32
    %c0_i32_0 = arith.constant 0 : i32
    return %arg0, %arg1, %c0_i32 : i32, i32, i32
  }
}

</mosaic_0001>

<llo_original>
// kernel: tpu_custom_call.1
$region0: #{tpu_custom_call.1}
  #allocation0 [shape = 'u32[]', space=smem, size = 0x4, offset = 0x4, fixed_abs, tag = 'smem constant byte address 0x4 - core index']
  #allocation1 [shape = 'u32[144,128]{1,0:T(1,128)}', space=vmem, size = 0x12000, scoped, tag = 'internal scratch']
  #allocation2 [shape = 'f32[4,8,1]{2,1,0:T(8,128)}', space=vmem, size = 0x4000, scoped, tag = 'scratch operand']
  #allocation3 [shape = 'f32[4,8,1]{2,1,0:T(8,128)}', space=vmem, size = 0x4000, scoped, tag = 'scratch operand']
  #allocation4 [shape = 'f32[4,8,8]{2,1,0:T(8,128)}', space=vmem, size = 0x4000, scoped, tag = 'scratch operand']
  %s0 = inlined_call_operand.hbm [shape: bf16[8,8], index: 0, kind: input, shape index: {}]
  %s1 = inlined_call_operand.vmem [shape: bf16[2,4,8,8], index: 1, kind: input, shape index: {}]
  %s2 = inlined_call_operand.vmem [shape: bf16[2,4,8,8], index: 2, kind: input, shape index: {}]
  %s3 = inlined_call_operand.hbm [shape: bf16[2,4,8,8], index: 3, kind: input, shape index: {}]
  %s4 = inlined_call_operand.hbm [shape: bf16[2,8,32], index: 4, kind: input, shape index: {}]
  %s5 = inlined_call_operand.vmem [shape: bf16[4,8,32], index: 5, kind: input, shape index: {}]
  %s6 = inlined_call_operand.vmem [shape: f32[1,32], index: 6, kind: input, shape index: {}]
  %s7 = inlined_call_operand.vmem [shape: f32[1,32], index: 7, kind: input, shape index: {}]
  %s8 = inlined_call_operand.hbm [shape: f32[1,32], index: 8, kind: input, shape index: {}]
  %s9 = inlined_call_operand.vmem [shape: bf16[32,128], index: 9, kind: input, shape index: {}]
  %s10 = inlined_call_operand.vmem [shape: f32[1,128], index: 10, kind: input, shape index: {}]
  %s11 = inlined_call_operand.vmem [shape: bf16[128,32], index: 11, kind: input, shape index: {}]
  %s12 = inlined_call_operand.vmem [shape: f32[1,32], index: 12, kind: input, shape index: {}]
  %s13 = inlined_call_operand.vmem [shape: f32[1,32], index: 13, kind: input, shape index: {}]
  %s14 = inlined_call_operand.vmem [shape: f32[1,32], index: 14, kind: input, shape index: {}]
  %s15 = inlined_call_operand.hbm [shape: f32[2,8,32], index: 15, kind: output, shape index: {}]
  %s16 = sld [smem:[#allocation0]]
  $region117: #{tpu_custom_call.1} parent=0
    _
  %s18 = ssub.s32 1, %s16
  %s19 = scalar_select 0, %s18, %s16
  $region1: #{tpu_custom_call.1} parent=0
    #allocation5 [shape = 'u8[2048]{0}', space=vmem, size = 0x800, scoped, tag = 'input window, operand 0, single buffered']
    #allocation6 [shape = 's32[2]{0}', space=sflag, size = 0x8, scoped, tag = 'scoped memory for tpu_custom_call.1']
    #allocation7 [shape = 's32[2]{0}', space=sflag, size = 0x8, scoped, tag = 'scoped memory for tpu_custom_call.1']
    #allocation8 [shape = 'u8[16384]{0}', space=vmem, size = 0x4000, scoped, tag = 'input window, operand 3']
    #allocation9 [shape = 's32[2]{0}', space=sflag, size = 0x8, scoped, tag = 'scoped memory for tpu_custom_call.1']
    #allocation10 [shape = 'u8[4096]{0}', space=vmem, size = 0x1000, scoped, tag = 'input window, operand 4']
    #allocation11 [shape = 'u8[512]{0}', space=vmem, size = 0x400, scoped, tag = 'input window, operand 8, single buffered']
    #allocation12 [shape = 's32[1]{0}', space=sflag, size = 0x4, scoped, tag = 'scoped memory for tpu_custom_call.1']
    #allocation13 [shape = 'u8[8192]{0}', space=vmem, size = 0x2000, scoped, tag = 'output window, operand 0']
    %20 = vsyncpa [#allocation6], 0
    %21 = vsyncpa [#allocation9], 0
    %s22 = scalar_lea.sflag [#allocation9], 1
    %23 = vsyncpa %s22, 0
    %24 = vsyncpa [#allocation12], 0
    %25 = vsyncpa [#allocation7], 0
    %s26 = scalar_lea.sflag [#allocation7], 1
    %27 = vsyncpa %s26, 0
    loop: start=0, step=1, limit=4
    $region2: #{tpu_custom_call.1} parent=1 // loop_pre_header
      _
    $region3: #{tpu_custom_call.1} parent=1 // loop_header
      %s29 = sphi 0, %s33
      %p30 = scmp.ge.s32.totalorder %s29, 4
      %s36 = sphi 0, %s55
      %s37 = sphi 0, %s51
      %s38 = sphi 0, %s47
      %s39 = sphi 0, %s36
      %s40 = sphi 0, %s37
      %s41 = sphi 0, %s38
      %s42 = sphi 0, %s39
      %s43 = sphi 0, %s40
      %s44 = sphi 0, %s41
      %s60 = sphi 0, %s62
      %s63 = sphi 0, %s60
      %s64 = sphi 0, %s63
      %s80 = sphi 0, %s64
      %s88 = sphi 0, %s90
      %s91 = sphi 0, %s88
      %s92 = sphi 0, %s91
      %s108 = sphi 0, %s92
      %s116 = sphi 0, %s118
      %s119 = sphi 0, %s116
      %s120 = sphi 0, %s119
      %s136 = sphi 0, %s120
      %s144 = sphi 0, %s146
      %s147 = sphi 0, %s144
      %s148 = sphi 0, %s147
      %s164 = sphi 0, %s148
      %s172 = sphi 0, %s174
      %s175 = sphi 0, %s172
      %s176 = sphi 0, %s175
      %s192 = sphi 0, %s176
      %s196 = sphi 0, %s196
      %s198 = sphi 0, %s196
      %s199 = sphi 0, %s198
      %s213 = sphi 0, %s199
      %s217 = sphi 0, %s217
      %s219 = sphi 0, %s217
      %s220 = sphi 0, %s219
      %s234 = sphi 0, %s220
      %s238 = sphi 0, %s238
      %s240 = sphi 0, %s238
      %s241 = sphi 0, %s240
      %s255 = sphi 0, %s241
      %s259 = sphi 0, %s259
      %s261 = sphi 0, %s259
      %s262 = sphi 0, %s261
      %s276 = sphi 0, %s262
      %s280 = sphi 0, %s280
      %s282 = sphi 0, %s280
      %s283 = sphi 0, %s282
      %s297 = sphi 0, %s283
      %s301 = sphi 0, %s301
      %s303 = sphi 0, %s301
      %s304 = sphi 0, %s303
      %s318 = sphi 0, %s304
      %s322 = sphi 0, %s322
      %s324 = sphi 0, %s322
      %s325 = sphi 0, %s324
      %s339 = sphi 0, %s325
      %s343 = sphi 0, %s343
      %s345 = sphi 0, %s343
      %s346 = sphi 0, %s345
      %s360 = sphi 0, %s346
      %s364 = sphi 0, %s364
      %s366 = sphi 0, %s364
      %s367 = sphi 0, %s366
      %s381 = sphi 0, %s367
      %s385 = sphi 0, %s385
      %s387 = sphi 0, %s385
      %s388 = sphi 0, %s387
      %s402 = sphi 0, %s388
      %s410 = sphi 0, %s412
      %s413 = sphi 0, %s410
      %s414 = sphi 0, %s413
      %s430 = sphi 0, %s414
    $region4: #{tpu_custom_call.1} parent=1 // loop_header_branch
      %32 = sbr.rel (%p30) target = $region8
    $region5: #{tpu_custom_call.1} parent=1 // loop_body
      %s34 = ssub.s32 %s29, 1
      %s35 = ssub.s32 %s29, 2
      %s45 = sadd.s32 1, %s38
      %p46 = scmp.ge.s32.totalorder %s45, 1
      %s47 = scalar_select %p46, 0, %s45
      %s48 = sadd.s32 1, %s37
      %s49 = scalar_select %p46, %s48, %s37
      %p50 = scmp.ge.s32.totalorder %s49, 1
      %s51 = scalar_select %p50, 0, %s49
      %s52 = sadd.s32 1, %s36
      %s53 = scalar_select %p50, %s52, %s36
      %p54 = scmp.ge.s32.totalorder %s53, 2
      %s55 = scalar_select %p54, 0, %s53
      %s56 = ssub.s32 %s37, %s51
      %s57 = ssub.s32 %s38, %s47
      %s58 = sor.u32 %s56, %s57
      %p59 = scmp.eq.s32.totalorder %s58, 0
      %s61 = sadd.s32 %s60, 1
      %s62 = scalar_select %p59, %s60, %s61
      %p65 = pneg %p59
      %p66 = scmp.eq.s32.totalorder %s29, 1
      %p67 = por %p65, %p66
      %p68 = scmp.ne.s32.totalorder %s60, %s63
      %p69 = scmp.eq.s32.totalorder %s29, 0
      %p70 = por %p68, %p69
      %p71 = scmp.ne.s32.totalorder %s60, %s63
      %p72 = scmp.eq.s32.totalorder %s34, 1
      %p73 = por %p71, %p72
      %p74 = scmp.ne.s32.totalorder %s63, %s64
      %p75 = scmp.eq.s32.totalorder %s34, 0
      %p76 = por %p74, %p75
      %p77 = scmp.ne.s32.totalorder %s63, %s64
      %p78 = scmp.eq.s32.totalorder %s35, 1
      %p79 = por %p77, %p78
      %p81 = scmp.ne.s32.totalorder %s64, %s80
      %p82 = scmp.eq.s32.totalorder %s35, 0
      %p83 = por %p81, %p82
      %s84 = ssub.s32 %s36, %s55
      %s85 = ssub.s32 %s37, %s51
      %s86 = sor.u32 %s84, %s85
      %p87 = scmp.eq.s32.totalorder %s86, 0
      %s89 = sadd.s32 %s88, 1
      %s90 = scalar_select %p87, %s88, %s89
      %p93 = pneg %p87
      %p94 = scmp.eq.s32.totalorder %s29, 1
      %p95 = por %p93, %p94
      %p96 = scmp.ne.s32.totalorder %s88, %s91
      %p97 = scmp.eq.s32.totalorder %s29, 0
      %p98 = por %p96, %p97
      %p99 = scmp.ne.s32.totalorder %s88, %s91
      %p100 = scmp.eq.s32.totalorder %s34, 1
      %p101 = por %p99, %p100
      %p102 = scmp.ne.s32.totalorder %s91, %s92
      %p103 = scmp.eq.s32.totalorder %s34, 0
      %p104 = por %p102, %p103
      %p105 = scmp.ne.s32.totalorder %s91, %s92
      %p106 = scmp.eq.s32.totalorder %s35, 1
      %p107 = por %p105, %p106
      %p109 = scmp.ne.s32.totalorder %s92, %s108
      %p110 = scmp.eq.s32.totalorder %s35, 0
      %p111 = por %p109, %p110
      %s112 = ssub.s32 %s36, %s55
      %s113 = ssub.s32 %s38, %s47
      %s114 = sor.u32 %s112, %s113
      %p115 = scmp.eq.s32.totalorder %s114, 0
      %s117 = sadd.s32 %s116, 1
      %s118 = scalar_select %p115, %s116, %s117
      %p121 = pneg %p115
      %p122 = scmp.eq.s32.totalorder %s29, 1
      %p123 = por %p121, %p122
      %p124 = scmp.ne.s32.totalorder %s116, %s119
      %p125 = scmp.eq.s32.totalorder %s29, 0
      %p126 = por %p124, %p125
      %p127 = scmp.ne.s32.totalorder %s116, %s119
      %p128 = scmp.eq.s32.totalorder %s34, 1
      %p129 = por %p127, %p128
      %p130 = scmp.ne.s32.totalorder %s119, %s120
      %p131 = scmp.eq.s32.totalorder %s34, 0
      %p132 = por %p130, %p131
      %p133 = scmp.ne.s32.totalorder %s119, %s120
      %p134 = scmp.eq.s32.totalorder %s35, 1
      %p135 = por %p133, %p134
      %p137 = scmp.ne.s32.totalorder %s120, %s136
      %p138 = scmp.eq.s32.totalorder %s35, 0
      %p139 = por %p137, %p138
      %s140 = ssub.s32 %s36, %s55
      %s141 = ssub.s32 %s38, %s47
      %s142 = sor.u32 %s140, %s141
      %p143 = scmp.eq.s32.totalorder %s142, 0
      %s145 = sadd.s32 %s144, 1
      %s146 = scalar_select %p143, %s144, %s145
      %p149 = pneg %p143
      %p150 = scmp.eq.s32.totalorder %s29, 1
      %p151 = por %p149, %p150
      %p152 = scmp.ne.s32.totalorder %s144, %s147
      %p153 = scmp.eq.s32.totalorder %s29, 0
      %p154 = por %p152, %p153
      %p155 = scmp.ne.s32.totalorder %s144, %s147
      %p156 = scmp.eq.s32.totalorder %s34, 1
      %p157 = por %p155, %p156
      %p158 = scmp.ne.s32.totalorder %s147, %s148
      %p159 = scmp.eq.s32.totalorder %s34, 0
      %p160 = por %p158, %p159
      %p161 = scmp.ne.s32.totalorder %s147, %s148
      %p162 = scmp.eq.s32.totalorder %s35, 1
      %p163 = por %p161, %p162
      %p165 = scmp.ne.s32.totalorder %s148, %s164
      %p166 = scmp.eq.s32.totalorder %s35, 0
      %p167 = por %p165, %p166
      %s168 = ssub.s32 %s36, %s55
      %s169 = ssub.s32 %s37, %s51
      %s170 = sor.u32 %s168, %s169
      %p171 = scmp.eq.s32.totalorder %s170, 0
      %s173 = sadd.s32 %s172, 1
      %s174 = scalar_select %p171, %s172, %s173
      %p177 = pneg %p171
      %p178 = scmp.eq.s32.totalorder %s29, 1
      %p179 = por %p177, %p178
      %p180 = scmp.ne.s32.totalorder %s172, %s175
      %p181 = scmp.eq.s32.totalorder %s29, 0
      %p182 = por %p180, %p181
      %p183 = scmp.ne.s32.totalorder %s172, %s175
      %p184 = scmp.eq.s32.totalorder %s34, 1
      %p185 = por %p183, %p184
      %p186 = scmp.ne.s32.totalorder %s175, %s176
      %p187 = scmp.eq.s32.totalorder %s34, 0
      %p188 = por %p186, %p187
      %p189 = scmp.ne.s32.totalorder %s175, %s176
      %p190 = scmp.eq.s32.totalorder %s35, 1
      %p191 = por %p189, %p190
      %p193 = scmp.ne.s32.totalorder %s176, %s192
      %p194 = scmp.eq.s32.totalorder %s35, 0
      %p195 = por %p193, %p194
      %s197 = sadd.s32 %s196, 1
      %p200 = scmp.eq.s32.totalorder %s29, 1
      %p201 = scmp.ne.s32.totalorder %s196, %s198
      %p202 = scmp.eq.s32.totalorder %s29, 0
      %p203 = por %p201, %p202
      %p204 = scmp.ne.s32.totalorder %s196, %s198
      %p205 = scmp.eq.s32.totalorder %s34, 1
      %p206 = por %p204, %p205
      %p207 = scmp.ne.s32.totalorder %s198, %s199
      %p208 = scmp.eq.s32.totalorder %s34, 0
      %p209 = por %p207, %p208
      %p210 = scmp.ne.s32.totalorder %s198, %s199
      %p211 = scmp.eq.s32.totalorder %s35, 1
      %p212 = por %p210, %p211
      %p214 = scmp.ne.s32.totalorder %s199, %s213
      %p215 = scmp.eq.s32.totalorder %s35, 0
      %p216 = por %p214, %p215
      %s218 = sadd.s32 %s217, 1
      %p221 = scmp.eq.s32.totalorder %s29, 1
      %p222 = scmp.ne.s32.totalorder %s217, %s219
      %p223 = scmp.eq.s32.totalorder %s29, 0
      %p224 = por %p222, %p223
      %p225 = scmp.ne.s32.totalorder %s217, %s219
      %p226 = scmp.eq.s32.totalorder %s34, 1
      %p227 = por %p225, %p226
      %p228 = scmp.ne.s32.totalorder %s219, %s220
      %p229 = scmp.eq.s32.totalorder %s34, 0
      %p230 = por %p228, %p229
      %p231 = scmp.ne.s32.totalorder %s219, %s220
      %p232 = scmp.eq.s32.totalorder %s35, 1
      %p233 = por %p231, %p232
      %p235 = scmp.ne.s32.totalorder %s220, %s234
      %p236 = scmp.eq.s32.totalorder %s35, 0
      %p237 = por %p235, %p236
      %s239 = sadd.s32 %s238, 1
      %p242 = scmp.eq.s32.totalorder %s29, 1
      %p243 = scmp.ne.s32.totalorder %s238, %s240
      %p244 = scmp.eq.s32.totalorder %s29, 0
      %p245 = por %p243, %p244
      %p246 = scmp.ne.s32.totalorder %s238, %s240
      %p247 = scmp.eq.s32.totalorder %s34, 1
      %p248 = por %p246, %p247
      %p249 = scmp.ne.s32.totalorder %s240, %s241
      %p250 = scmp.eq.s32.totalorder %s34, 0
      %p251 = por %p249, %p250
      %p252 = scmp.ne.s32.totalorder %s240, %s241
      %p253 = scmp.eq.s32.totalorder %s35, 1
      %p254 = por %p252, %p253
      %p256 = scmp.ne.s32.totalorder %s241, %s255
      %p257 = scmp.eq.s32.totalorder %s35, 0
      %p258 = por %p256, %p257
      %s260 = sadd.s32 %s259, 1
      %p263 = scmp.eq.s32.totalorder %s29, 1
      %p264 = scmp.ne.s32.totalorder %s259, %s261
      %p265 = scmp.eq.s32.totalorder %s29, 0
      %p266 = por %p264, %p265
      %p267 = scmp.ne.s32.totalorder %s259, %s261
      %p268 = scmp.eq.s32.totalorder %s34, 1
      %p269 = por %p267, %p268
      %p270 = scmp.ne.s32.totalorder %s261, %s262
      %p271 = scmp.eq.s32.totalorder %s34, 0
      %p272 = por %p270, %p271
      %p273 = scmp.ne.s32.totalorder %s261, %s262
      %p274 = scmp.eq.s32.totalorder %s35, 1
      %p275 = por %p273, %p274
      %p277 = scmp.ne.s32.totalorder %s262, %s276
      %p278 = scmp.eq.s32.totalorder %s35, 0
      %p279 = por %p277, %p278
      %s281 = sadd.s32 %s280, 1
      %p284 = scmp.eq.s32.totalorder %s29, 1
      %p285 = scmp.ne.s32.totalorder %s280, %s282
      %p286 = scmp.eq.s32.totalorder %s29, 0
      %p287 = por %p285, %p286
      %p288 = scmp.ne.s32.totalorder %s280, %s282
      %p289 = scmp.eq.s32.totalorder %s34, 1
      %p290 = por %p288, %p289
      %p291 = scmp.ne.s32.totalorder %s282, %s283
      %p292 = scmp.eq.s32.totalorder %s34, 0
      %p293 = por %p291, %p292
      %p294 = scmp.ne.s32.totalorder %s282, %s283
      %p295 = scmp.eq.s32.totalorder %s35, 1
      %p296 = por %p294, %p295
      %p298 = scmp.ne.s32.totalorder %s283, %s297
      %p299 = scmp.eq.s32.totalorder %s35, 0
      %p300 = por %p298, %p299
      %s302 = sadd.s32 %s301, 1
      %p305 = scmp.eq.s32.totalorder %s29, 1
      %p306 = scmp.ne.s32.totalorder %s301, %s303
      %p307 = scmp.eq.s32.totalorder %s29, 0
      %p308 = por %p306, %p307
      %p309 = scmp.ne.s32.totalorder %s301, %s303
      %p310 = scmp.eq.s32.totalorder %s34, 1
      %p311 = por %p309, %p310
      %p312 = scmp.ne.s32.totalorder %s303, %s304
      %p313 = scmp.eq.s32.totalorder %s34, 0
      %p314 = por %p312, %p313
      %p315 = scmp.ne.s32.totalorder %s303, %s304
      %p316 = scmp.eq.s32.totalorder %s35, 1
      %p317 = por %p315, %p316
      %p319 = scmp.ne.s32.totalorder %s304, %s318
      %p320 = scmp.eq.s32.totalorder %s35, 0
      %p321 = por %p319, %p320
      %s323 = sadd.s32 %s322, 1
      %p326 = scmp.eq.s32.totalorder %s29, 1
      %p327 = scmp.ne.s32.totalorder %s322, %s324
      %p328 = scmp.eq.s32.totalorder %s29, 0
      %p329 = por %p327, %p328
      %p330 = scmp.ne.s32.totalorder %s322, %s324
      %p331 = scmp.eq.s32.totalorder %s34, 1
      %p332 = por %p330, %p331
      %p333 = scmp.ne.s32.totalorder %s324, %s325
      %p334 = scmp.eq.s32.totalorder %s34, 0
      %p335 = por %p333, %p334
      %p336 = scmp.ne.s32.totalorder %s324, %s325
      %p337 = scmp.eq.s32.totalorder %s35, 1
      %p338 = por %p336, %p337
      %p340 = scmp.ne.s32.totalorder %s325, %s339
      %p341 = scmp.eq.s32.totalorder %s35, 0
      %p342 = por %p340, %p341
      %s344 = sadd.s32 %s343, 1
      %p347 = scmp.eq.s32.totalorder %s29, 1
      %p348 = scmp.ne.s32.totalorder %s343, %s345
      %p349 = scmp.eq.s32.totalorder %s29, 0
      %p350 = por %p348, %p349
      %p351 = scmp.ne.s32.totalorder %s343, %s345
      %p352 = scmp.eq.s32.totalorder %s34, 1
      %p353 = por %p351, %p352
      %p354 = scmp.ne.s32.totalorder %s345, %s346
      %p355 = scmp.eq.s32.totalorder %s34, 0
      %p356 = por %p354, %p355
      %p357 = scmp.ne.s32.totalorder %s345, %s346
      %p358 = scmp.eq.s32.totalorder %s35, 1
      %p359 = por %p357, %p358
      %p361 = scmp.ne.s32.totalorder %s346, %s360
      %p362 = scmp.eq.s32.totalorder %s35, 0
      %p363 = por %p361, %p362
      %s365 = sadd.s32 %s364, 1
      %p368 = scmp.eq.s32.totalorder %s29, 1
      %p369 = scmp.ne.s32.totalorder %s364, %s366
      %p370 = scmp.eq.s32.totalorder %s29, 0
      %p371 = por %p369, %p370
      %p372 = scmp.ne.s32.totalorder %s364, %s366
      %p373 = scmp.eq.s32.totalorder %s34, 1
      %p374 = por %p372, %p373
      %p375 = scmp.ne.s32.totalorder %s366, %s367
      %p376 = scmp.eq.s32.totalorder %s34, 0
      %p377 = por %p375, %p376
      %p378 = scmp.ne.s32.totalorder %s366, %s367
      %p379 = scmp.eq.s32.totalorder %s35, 1
      %p380 = por %p378, %p379
      %p382 = scmp.ne.s32.totalorder %s367, %s381
      %p383 = scmp.eq.s32.totalorder %s35, 0
      %p384 = por %p382, %p383
      %s386 = sadd.s32 %s385, 1
      %p389 = scmp.eq.s32.totalorder %s29, 1
      %p390 = scmp.ne.s32.totalorder %s385, %s387
      %p391 = scmp.eq.s32.totalorder %s29, 0
      %p392 = por %p390, %p391
      %p393 = scmp.ne.s32.totalorder %s385, %s387
      %p394 = scmp.eq.s32.totalorder %s34, 1
      %p395 = por %p393, %p394
      %p396 = scmp.ne.s32.totalorder %s387, %s388
      %p397 = scmp.eq.s32.totalorder %s34, 0
      %p398 = por %p396, %p397
      %p399 = scmp.ne.s32.totalorder %s387, %s388
      %p400 = scmp.eq.s32.totalorder %s35, 1
      %p401 = por %p399, %p400
      %p403 = scmp.ne.s32.totalorder %s388, %s402
      %p404 = scmp.eq.s32.totalorder %s35, 0
      %p405 = por %p403, %p404
      %s406 = ssub.s32 %s36, %s55
      %s407 = ssub.s32 %s37, %s51
      %s408 = sor.u32 %s406, %s407
      %p409 = scmp.eq.s32.totalorder %s408, 0
      %s411 = sadd.s32 %s410, 1
      %s412 = scalar_select %p409, %s410, %s411
      %p415 = pneg %p409
      %p416 = scmp.eq.s32.totalorder %s29, 1
      %p417 = por %p415, %p416
      %p418 = scmp.ne.s32.totalorder %s410, %s413
      %p419 = scmp.eq.s32.totalorder %s29, 0
      %p420 = por %p418, %p419
      %p421 = scmp.ne.s32.totalorder %s410, %s413
      %p422 = scmp.eq.s32.totalorder %s34, 1
      %p423 = por %p421, %p422
      %p424 = scmp.ne.s32.totalorder %s413, %s414
      %p425 = scmp.eq.s32.totalorder %s34, 0
      %p426 = por %p424, %p425
      %p427 = scmp.ne.s32.totalorder %s413, %s414
      %p428 = scmp.eq.s32.totalorder %s35, 1
      %p429 = por %p427, %p428
      %p431 = scmp.ne.s32.totalorder %s414, %s430
      %p432 = scmp.eq.s32.totalorder %s35, 0
      %p433 = por %p431, %p432
      %p434 = scmp.le.s32.totalorder 1, %s29
      %p435 = scmp.lt.s32.totalorder %s29, 3
      %p436 = pnand %p434, %p435
      %p437 = pneg %p436
      // Predicated region
      $region9: #{tpu_custom_call.1} parent=5 // pred_check
        _
      $region10: #{tpu_custom_call.1} parent=5 // pred_check_branch
        %439 = sbr.rel (%p436) target = $region12
      $region11: #{tpu_custom_call.1} parent=5 // pred_region
        %s440 = ssub.s32 %s29, 1
        // Predicated region
        $region13: #{tpu_custom_call.1} parent=11 // pred_check
          %p441 = pneg %p76
        $region14: #{tpu_custom_call.1} parent=11 // pred_check_branch
          %443 = sbr.rel (%p441) target = $region16
        $region15: #{tpu_custom_call.1} parent=11 // pred_region
          %s445 = ssub.s32 64, 64
          %446 = vsyncadd [#allocation6], %s445
          %s447 = sadd.s32 %s41, %s40
          %s448 = smul.addr %s447, 64
          %s449 = scalar_lea.hbm %s0, %s448
          %s451 = sshll.u32 [#allocation5], 4
          %s452 = int_to_ptr.vmem [resolvable:$true] %s451
          %454 = dma.hbm_to_vmem [thread:$0]  %s449, 64, %s452, [#allocation6]
        $region16: #{tpu_custom_call.1} parent=11 // pred_fallthru
          _
        // Predicated region
        $region17: #{tpu_custom_call.1} parent=11 // pred_check
          %p455 = pneg %p209
        $region18: #{tpu_custom_call.1} parent=11 // pred_check_branch
          %457 = sbr.rel (%p455) target = $region20
        $region19: #{tpu_custom_call.1} parent=11 // pred_region
          _
        $region20: #{tpu_custom_call.1} parent=11 // pred_fallthru
          _
        // Predicated region
        $region21: #{tpu_custom_call.1} parent=11 // pred_check
          %p458 = pneg %p230
        $region22: #{tpu_custom_call.1} parent=11 // pred_check_branch
          %460 = sbr.rel (%p458) target = $region24
        $region23: #{tpu_custom_call.1} parent=11 // pred_region
          _
        $region24: #{tpu_custom_call.1} parent=11 // pred_fallthru
          _
        // Predicated region
        $region25: #{tpu_custom_call.1} parent=11 // pred_check
          %p461 = pneg %p251
        $region26: #{tpu_custom_call.1} parent=11 // pred_check_branch
          %463 = sbr.rel (%p461) target = $region28
        $region27: #{tpu_custom_call.1} parent=11 // pred_region
          _
        $region28: #{tpu_custom_call.1} parent=11 // pred_fallthru
          _
        // Predicated region
        $region29: #{tpu_custom_call.1} parent=11 // pred_check
          %p464 = pneg %p272
        $region30: #{tpu_custom_call.1} parent=11 // pred_check_branch
          %466 = sbr.rel (%p464) target = $region32
        $region31: #{tpu_custom_call.1} parent=11 // pred_region
          %s468 = ssub.s32 16, 16
          %469 = vsyncadd [#allocation12], %s468
          %s471 = sshll.u32 [#allocation11], 4
          %s472 = int_to_ptr.vmem [resolvable:$true] %s471
          %474 = dma.hbm_to_vmem [thread:$0]  %s8, 16, %s472, [#allocation12]
        $region32: #{tpu_custom_call.1} parent=11 // pred_fallthru
          _
        // Predicated region
        $region33: #{tpu_custom_call.1} parent=11 // pred_check
          %p475 = pneg %p293
        $region34: #{tpu_custom_call.1} parent=11 // pred_check_branch
          %477 = sbr.rel (%p475) target = $region36
        $region35: #{tpu_custom_call.1} parent=11 // pred_region
          _
        $region36: #{tpu_custom_call.1} parent=11 // pred_fallthru
          _
        // Predicated region
        $region37: #{tpu_custom_call.1} parent=11 // pred_check
          %p478 = pneg %p314
        $region38: #{tpu_custom_call.1} parent=11 // pred_check_branch
          %480 = sbr.rel (%p478) target = $region40
        $region39: #{tpu_custom_call.1} parent=11 // pred_region
          _
        $region40: #{tpu_custom_call.1} parent=11 // pred_fallthru
          _
        // Predicated region
        $region41: #{tpu_custom_call.1} parent=11 // pred_check
          %p481 = pneg %p335
        $region42: #{tpu_custom_call.1} parent=11 // pred_check_branch
          %483 = sbr.rel (%p481) target = $region44
        $region43: #{tpu_custom_call.1} parent=11 // pred_region
          _
        $region44: #{tpu_custom_call.1} parent=11 // pred_fallthru
          _
        // Predicated region
        $region45: #{tpu_custom_call.1} parent=11 // pred_check
          %p484 = pneg %p356
        $region46: #{tpu_custom_call.1} parent=11 // pred_check_branch
          %486 = sbr.rel (%p484) target = $region48
        $region47: #{tpu_custom_call.1} parent=11 // pred_region
          _
        $region48: #{tpu_custom_call.1} parent=11 // pred_fallthru
          _
        // Predicated region
        $region49: #{tpu_custom_call.1} parent=11 // pred_check
          %p487 = pneg %p377
        $region50: #{tpu_custom_call.1} parent=11 // pred_check_branch
          %489 = sbr.rel (%p487) target = $region52
        $region51: #{tpu_custom_call.1} parent=11 // pred_region
          _
        $region52: #{tpu_custom_call.1} parent=11 // pred_fallthru
          _
        // Predicated region
        $region53: #{tpu_custom_call.1} parent=11 // pred_check
          %p490 = pneg %p398
        $region54: #{tpu_custom_call.1} parent=11 // pred_check_branch
          %492 = sbr.rel (%p490) target = $region56
        $region55: #{tpu_custom_call.1} parent=11 // pred_region
          _
        $region56: #{tpu_custom_call.1} parent=11 // pred_fallthru
          _
      $region12: #{tpu_custom_call.1} parent=5 // pred_fallthru
        _
      %p493 = scmp.lt.s32.totalorder %s29, 2
      // Predicated region
      $region57: #{tpu_custom_call.1} parent=5 // pred_check
        %p494 = pneg %p493
      $region58: #{tpu_custom_call.1} parent=5 // pred_check_branch
        %496 = sbr.rel (%p494) target = $region60
      $region59: #{tpu_custom_call.1} parent=5 // pred_region
        // Predicated region
        $region61: #{tpu_custom_call.1} parent=59 // pred_check
          %p497 = pneg %p98
        $region62: #{tpu_custom_call.1} parent=59 // pred_check_branch
          %499 = sbr.rel (%p497) target = $region64
        $region63: #{tpu_custom_call.1} parent=59 // pred_region
          %p500 = scmp.lt.s32.totalorder %s36, 1
          %s501 = scalar_select %p500, %s36, 1
          %p502 = scmp.lt.s32.totalorder %s37, 0
          %s503 = scalar_select %p502, %s37, 0
          %s504 = smul.addr %s501, 4
          %s505 = sadd.s32 %s503, %s504
          %s506 = smul.addr %s505, 4
          %s507 = scalar_lea.vmem %s1, %s506
        $region64: #{tpu_custom_call.1} parent=59 // pred_fallthru
          _
        // Predicated region
        $region65: #{tpu_custom_call.1} parent=59 // pred_check
          %p508 = pneg %p126
        $region66: #{tpu_custom_call.1} parent=59 // pred_check_branch
          %510 = sbr.rel (%p508) target = $region68
        $region67: #{tpu_custom_call.1} parent=59 // pred_region
          %p511 = scmp.lt.s32.totalorder %s36, 1
          %s512 = scalar_select %p511, %s36, 1
          %p513 = scmp.lt.s32.totalorder %s38, 0
          %s514 = scalar_select %p513, %s38, 0
          %s515 = smul.addr %s512, 4
          %s516 = sadd.s32 %s514, %s515
          %s517 = smul.addr %s516, 4
          %s518 = scalar_lea.vmem %s2, %s517
        $region68: #{tpu_custom_call.1} parent=59 // pred_fallthru
          _
        // Predicated region
        $region69: #{tpu_custom_call.1} parent=59 // pred_check
          %p519 = pneg %p154
        $region70: #{tpu_custom_call.1} parent=59 // pred_check_branch
          %521 = sbr.rel (%p519) target = $region72
        $region71: #{tpu_custom_call.1} parent=59 // pred_region
          %s522 = sand.u32 %s29, 1
          %s523 = scalar_lea.sflag [#allocation9], %s522
          %s524 = sand.u32 %s144, 1
          %s525 = smul.addr %s524, 16
          %s526 = scalar_lea.vmem [#allocation8], %s525
          %s528 = ssub.s32 256, 256
          %529 = vsyncadd %s523, %s528
          %s530 = smul.addr %s36, 4
          %s531 = sadd.s32 %s38, %s530
          %s532 = smul.addr %s531, 64
          %s533 = scalar_lea.hbm %s3, %s532
          %s534 = sshll.u32 %s526, 4
          %s535 = int_to_ptr.vmem [resolvable:$true] %s534
          %540 = dma.hbm_to_vmem [thread:$0]  %s533, 256, %s535, %s523, 64, 64, 4
        $region72: #{tpu_custom_call.1} parent=59 // pred_fallthru
          _
        // Predicated region
        $region73: #{tpu_custom_call.1} parent=59 // pred_check
          %p541 = pneg %p182
        $region74: #{tpu_custom_call.1} parent=59 // pred_check_branch
          %543 = sbr.rel (%p541) target = $region76
        $region75: #{tpu_custom_call.1} parent=59 // pred_region
          %s544 = sand.u32 %s29, 1
          %s545 = scalar_lea.sflag [#allocation9], %s544
          %s546 = sand.u32 %s172, 1
          %s547 = smul.addr %s546, 4
          %s548 = scalar_lea.vmem [#allocation10], %s547
          %s550 = ssub.s32 64, 64
          %551 = vsyncadd %s545, %s550
          %s552 = sadd.s32 %s37, %s36
          %s553 = smul.addr %s552, 64
          %s554 = scalar_lea.hbm %s4, %s553
          %s556 = sshll.u32 %s548, 4
          %s557 = int_to_ptr.vmem [resolvable:$true] %s556
          %559 = dma.hbm_to_vmem [thread:$0]  %s554, 64, %s557, %s545
        $region76: #{tpu_custom_call.1} parent=59 // pred_fallthru
          _
      $region60: #{tpu_custom_call.1} parent=5 // pred_fallthru
        _
      %p560 = scmp.le.s32.totalorder 1, %s29
      %p561 = scmp.lt.s32.totalorder %s29, 3
      %p562 = pnand %p560, %p561
      %p563 = pneg %p562
      // Predicated region
      $region77: #{tpu_custom_call.1} parent=5 // pred_check
        _
      $region78: #{tpu_custom_call.1} parent=5 // pred_check_branch
        %565 = sbr.rel (%p562) target = $region80
      $region79: #{tpu_custom_call.1} parent=5 // pred_region
        %s566 = ssub.s32 %s29, 1
        // Predicated region
        $region81: #{tpu_custom_call.1} parent=79 // pred_check
          %p567 = pneg %p76
        $region82: #{tpu_custom_call.1} parent=79 // pred_check_branch
          %569 = sbr.rel (%p567) target = $region84
        $region83: #{tpu_custom_call.1} parent=79 // pred_region
          %570 = dma.done [#allocation6], 64
        $region84: #{tpu_custom_call.1} parent=79 // pred_fallthru
          _
        %s571 = sand.u32 %s34, 1
        %s572 = scalar_lea.sflag [#allocation9], %s571
        %s573 = sand.u32 %s147, 1
        %s574 = smul.addr %s573, 16
        %s575 = scalar_lea.vmem [#allocation8], %s574
        // Predicated region
        $region85: #{tpu_custom_call.1} parent=79 // pred_check
          %p576 = pneg %p160
        $region86: #{tpu_custom_call.1} parent=79 // pred_check_branch
          %578 = sbr.rel (%p576) target = $region88
        $region87: #{tpu_custom_call.1} parent=79 // pred_region
          %579 = dma.done %s572, 256
        $region88: #{tpu_custom_call.1} parent=79 // pred_fallthru
          _
        %s580 = sand.u32 %s34, 1
        %s581 = scalar_lea.sflag [#allocation9], %s580
        %s582 = sand.u32 %s175, 1
        %s583 = smul.addr %s582, 4
        %s584 = scalar_lea.vmem [#allocation10], %s583
        // Predicated region
        $region89: #{tpu_custom_call.1} parent=79 // pred_check
          %p585 = pneg %p188
        $region90: #{tpu_custom_call.1} parent=79 // pred_check_branch
          %587 = sbr.rel (%p585) target = $region92
        $region91: #{tpu_custom_call.1} parent=79 // pred_region
          %588 = dma.done %s581, 64
        $region92: #{tpu_custom_call.1} parent=79 // pred_fallthru
          _
        // Predicated region
        $region93: #{tpu_custom_call.1} parent=79 // pred_check
          %p589 = pneg %p272
        $region94: #{tpu_custom_call.1} parent=79 // pred_check_branch
          %591 = sbr.rel (%p589) target = $region96
        $region95: #{tpu_custom_call.1} parent=79 // pred_region
          %592 = dma.done [#allocation12], 16
        $region96: #{tpu_custom_call.1} parent=79 // pred_fallthru
          _
        %p593 = pneg %p76
        %p594 = pneg %p73
        %p595 = scmp.lt.s32.totalorder %s39, 1
        %s596 = scalar_select %p595, %s39, 1
        %p597 = scmp.lt.s32.totalorder %s40, 0
        %s598 = scalar_select %p597, %s40, 0
        %s599 = smul.addr %s596, 4
        %s600 = sadd.s32 %s598, %s599
        %s601 = smul.addr %s600, 4
        %s602 = scalar_lea.vmem %s1, %s601
        %p603 = pneg %p104
        %p604 = pneg %p101
        %p605 = scmp.lt.s32.totalorder %s39, 1
        %s606 = scalar_select %p605, %s39, 1
        %p607 = scmp.lt.s32.totalorder %s41, 0
        %s608 = scalar_select %p607, %s41, 0
        %s609 = smul.addr %s606, 4
        %s610 = sadd.s32 %s608, %s609
        %s611 = smul.addr %s610, 4
        %s612 = scalar_lea.vmem %s2, %s611
        %p613 = pneg %p132
        %p614 = pneg %p129
        %s615 = sand.u32 %s34, 1
        %s616 = scalar_lea.sflag [#allocation9], %s615
        %s617 = sand.u32 %s147, 1
        %s618 = smul.addr %s617, 16
        %s619 = scalar_lea.vmem [#allocation8], %s618
        %p620 = pneg %p160
        %p621 = pneg %p157
        %s622 = sand.u32 %s34, 1
        %s623 = scalar_lea.sflag [#allocation9], %s622
        %s624 = sand.u32 %s175, 1
        %s625 = smul.addr %s624, 4
        %s626 = scalar_lea.vmem [#allocation10], %s625
        %p627 = pneg %p188
        %p628 = pneg %p185
        %p629 = pneg %p209
        %p630 = pneg %p206
        %p631 = pneg %p230
        %p632 = pneg %p227
        %p633 = pneg %p251
        %p634 = pneg %p248
        %p635 = pneg %p272
        %p636 = pneg %p269
        %p637 = pneg %p293
        %p638 = pneg %p290
        %p639 = pneg %p314
        %p640 = pneg %p311
        %p641 = pneg %p335
        %p642 = pneg %p332
        %p643 = pneg %p356
        %p644 = pneg %p353
        %p645 = pneg %p377
        %p646 = pneg %p374
        %p647 = pneg %p398
        %p648 = pneg %p395
        %p649 = pneg %p426
        %p650 = pneg %p423
        %s651 = sand.u32 %s413, 1
        %s652 = scalar_lea.sflag [#allocation7], %s651
        %s653 = sand.u32 %s413, 1
        %s654 = smul.addr %s653, 8
        %s655 = scalar_lea.vmem [#allocation13], %s654
        %p656 = scmp.lt.s32.totalorder %s39, 1
        %s657 = scalar_select %p656, %s39, 1
        %p658 = scmp.lt.s32.totalorder %s40, 0
        %s659 = scalar_select %p658, %s40, 0
        %s660 = smul.addr %s657, 4
        %s661 = sadd.s32 %s659, %s660
        %s662 = smul.addr %s661, 4
        %s663 = scalar_lea.vmem %s1, %s662
        %p664 = scmp.lt.s32.totalorder %s39, 1
        %s665 = scalar_select %p664, %s39, 1
        %p666 = scmp.lt.s32.totalorder %s41, 0
        %s667 = scalar_select %p666, %s41, 0
        %s668 = smul.addr %s665, 4
        %s669 = sadd.s32 %s667, %s668
        %s670 = smul.addr %s669, 4
        %s671 = scalar_lea.vmem %s2, %s670
        %p673 = scmp.eq.s32.totalorder %s41, 0
        // Predicated region
        $region97: #{tpu_custom_call.1} parent=79 // pred_check
          %p674 = pneg %p673
        $region98: #{tpu_custom_call.1} parent=79 // pred_check_branch
          %676 = sbr.rel (%p674) target = $region100
        $region99: #{tpu_custom_call.1} parent=79 // pred_region
          %vm677 = vcmask 7168
          %678 = vst.msk [vmem:[#allocation2] sm:$0xff] %vm677, -inf
          %679 = vst.msk [vmem:[#allocation2 + $0x8] sm:$0xff] %vm677, -inf
          %680 = vst.msk [vmem:[#allocation2 + $0x10] sm:$0xff] %vm677, -inf
          %681 = vst.msk [vmem:[#allocation2 + $0x18] sm:$0xff] %vm677, -inf
          %682 = vst.msk [vmem:[#allocation3] sm:$0xff] %vm677, 0.0
          %683 = vst.msk [vmem:[#allocation3 + $0x8] sm:$0xff] %vm677, 0.0
          %684 = vst.msk [vmem:[#allocation3 + $0x10] sm:$0xff] %vm677, 0.0
          %685 = vst.msk [vmem:[#allocation3 + $0x18] sm:$0xff] %vm677, 0.0
          %vm686 = vcmask 64512
          %687 = vst.msk [vmem:[#allocation4] sm:$0xff] %vm686, 0.0
          %688 = vst.msk [vmem:[#allocation4 + $0x8] sm:$0xff] %vm686, 0.0
          %689 = vst.msk [vmem:[#allocation4 + $0x10] sm:$0xff] %vm686, 0.0
          %690 = vst.msk [vmem:[#allocation4 + $0x18] sm:$0xff] %vm686, 0.0
        $region100: #{tpu_custom_call.1} parent=79 // pred_fallthru
          _
        %v691 = vld [vmem:[%s663] sm:$0xf]
        %v692 = vld [vmem:[%s663 + $0x4] sm:$0xf]
        %v693 = vld [vmem:[%s663 + $0x8] sm:$0xf]
        %v694 = vld [vmem:[%s663 + $0xc] sm:$0xf]
        %v695 = vld [vmem:[%s671] sm:$0xf]
        %v696 = vld [vmem:[%s671 + $0x4] sm:$0xf]
        %v697 = vld [vmem:[%s671 + $0x8] sm:$0xf]
        %v698 = vld [vmem:[%s671 + $0xc] sm:$0xf]
        %v699 = vld [vmem:[%s575] sm:$0xf]
        %v700 = vld [vmem:[%s575 + $0x4] sm:$0xf]
        %v701 = vld [vmem:[%s575 + $0x8] sm:$0xf]
        %v702 = vld [vmem:[%s575 + $0xc] sm:$0xf]
        %v703 = vld [vmem:[#allocation5] sm:$0xf]
        %v704 = vunpack.c.l.bf16 %v703
        %vm705 = vcmask 64512
        %v707 = vsel %vm705, %v691, 0
        %v710 = vsel %vm705, %v695, 0
        %712 = vmatprep.subr.bf16.mxu0 0
        %713 = vmatpush1.bf16.xpose.msra.mxu0 %v710
        %714 = vmatprep.subr.bf16.mxu0 0
        %715 = vmatpush1.bf16.xpose.msra.mxu0 0
        %716 = vmatprep.subr.bf16.mxu0 0
        %717 = vmatpush1.bf16.xpose.msra.mxu0 0
        %718 = vmatprep.subr.bf16.mxu0 0
        %719 = vmatpush1.bf16.xpose.msra.mxu0 0
        %720 = vmatprep.subr.bf16.mxu0 0
        %721 = vmatpush1.bf16.xpose.msra.mxu0 0
        %722 = vmatprep.subr.bf16.mxu0 0
        %723 = vmatpush1.bf16.xpose.msra.mxu0 0
        %724 = vmatprep.subr.bf16.mxu0 0
        %725 = vmatpush1.bf16.xpose.msra.mxu0 0
        %726 = vmatprep.subr.bf16.mxu0 0
        %727 = vmatpush1.bf16.xpose.msra.mxu0 0
        %728 = vmatprep.subr.bf16.mxu0 0
        %729 = vmatpush1.bf16.xpose.msra.mxu0 0
        %730 = vmatprep.subr.bf16.mxu0 0
        %731 = vmatpush1.bf16.xpose.msra.mxu0 0
        %732 = vmatprep.subr.bf16.mxu0 0
        %733 = vmatpush1.bf16.xpose.msra.mxu0 0
        %734 = vmatprep.subr.bf16.mxu0 0
        %735 = vmatpush1.bf16.xpose.msra.mxu0 0
        %736 = vmatprep.subr.bf16.mxu0 0
        %737 = vmatpush1.bf16.xpose.msra.mxu0 0
        %738 = vmatprep.subr.bf16.mxu0 0
        %739 = vmatpush1.bf16.xpose.msra.mxu0 0
        %740 = vmatprep.subr.bf16.mxu0 0
        %741 = vmatpush1.bf16.xpose.msra.mxu0 0
        %742 = vmatprep.subr.bf16.mxu0 0
        %743 = vmatpush1.bf16.xpose.msra.mxu0 0
        %744 = vmatprep.mubr.bf16.mxu0 0
        %745 = vmatmul.mubr.bf16.gmra.mrb[0].mxu0 %v707
        %v746 = vpop.f32.mrb[0].mxu0
        %v747 = vadd.f32 %v704, %v746
        %v748 = vpop.f32.mrb[0].mxu0
        %v749 = vpop.f32.mrb[0].mxu0
        %v750 = vpop.f32.mrb[0].mxu0
        %751 = vdwg.mxu0
        %v753 = vsel %vm705, %v692, 0
        %v756 = vsel %vm705, %v696, 0
        %758 = vmatprep.subr.bf16.mxu0 0
        %759 = vmatpush1.bf16.xpose.msra.mxu0 %v756
        %760 = vmatprep.subr.bf16.mxu0 0
        %761 = vmatpush1.bf16.xpose.msra.mxu0 0
        %762 = vmatprep.subr.bf16.mxu0 0
        %763 = vmatpush1.bf16.xpose.msra.mxu0 0
        %764 = vmatprep.subr.bf16.mxu0 0
        %765 = vmatpush1.bf16.xpose.msra.mxu0 0
        %766 = vmatprep.subr.bf16.mxu0 0
        %767 = vmatpush1.bf16.xpose.msra.mxu0 0
        %768 = vmatprep.subr.bf16.mxu0 0
        %769 = vmatpush1.bf16.xpose.msra.mxu0 0
        %770 = vmatprep.subr.bf16.mxu0 0
        %771 = vmatpush1.bf16.xpose.msra.mxu0 0
        %772 = vmatprep.subr.bf16.mxu0 0
        %773 = vmatpush1.bf16.xpose.msra.mxu0 0
        %774 = vmatprep.subr.bf16.mxu0 0
        %775 = vmatpush1.bf16.xpose.msra.mxu0 0
        %776 = vmatprep.subr.bf16.mxu0 0
        %777 = vmatpush1.bf16.xpose.msra.mxu0 0
        %778 = vmatprep.subr.bf16.mxu0 0
        %779 = vmatpush1.bf16.xpose.msra.mxu0 0
        %780 = vmatprep.subr.bf16.mxu0 0
        %781 = vmatpush1.bf16.xpose.msra.mxu0 0
        %782 = vmatprep.subr.bf16.mxu0 0
        %783 = vmatpush1.bf16.xpose.msra.mxu0 0
        %784 = vmatprep.subr.bf16.mxu0 0
        %785 = vmatpush1.bf16.xpose.msra.mxu0 0
        %786 = vmatprep.subr.bf16.mxu0 0
        %787 = vmatpush1.bf16.xpose.msra.mxu0 0
        %788 = vmatprep.subr.bf16.mxu0 0
        %789 = vmatpush1.bf16.xpose.msra.mxu0 0
        %790 = vmatprep.mubr.bf16.mxu0 0
        %791 = vmatmul.mubr.bf16.gmra.mrb[0].mxu0 %v753
        %v792 = vpop.f32.mrb[0].mxu0
        %v793 = vadd.f32 %v704, %v792
        %v794 = vpop.f32.mrb[0].mxu0
        %v795 = vpop.f32.mrb[0].mxu0
        %v796 = vpop.f32.mrb[0].mxu0
        %797 = vdwg.mxu0
        %v799 = vsel %vm705, %v693, 0
        %v802 = vsel %vm705, %v697, 0
        %804 = vmatprep.subr.bf16.mxu0 0
        %805 = vmatpush1.bf16.xpose.msra.mxu0 %v802
        %806 = vmatprep.subr.bf16.mxu0 0
        %807 = vmatpush1.bf16.xpose.msra.mxu0 0
        %808 = vmatprep.subr.bf16.mxu0 0
        %809 = vmatpush1.bf16.xpose.msra.mxu0 0
        %810 = vmatprep.subr.bf16.mxu0 0
        %811 = vmatpush1.bf16.xpose.msra.mxu0 0
        %812 = vmatprep.subr.bf16.mxu0 0
        %813 = vmatpush1.bf16.xpose.msra.mxu0 0
        %814 = vmatprep.subr.bf16.mxu0 0
        %815 = vmatpush1.bf16.xpose.msra.mxu0 0
        %816 = vmatprep.subr.bf16.mxu0 0
        %817 = vmatpush1.bf16.xpose.msra.mxu0 0
        %818 = vmatprep.subr.bf16.mxu0 0
        %819 = vmatpush1.bf16.xpose.msra.mxu0 0
        %820 = vmatprep.subr.bf16.mxu0 0
        %821 = vmatpush1.bf16.xpose.msra.mxu0 0
        %822 = vmatprep.subr.bf16.mxu0 0
        %823 = vmatpush1.bf16.xpose.msra.mxu0 0
        %824 = vmatprep.subr.bf16.mxu0 0
        %825 = vmatpush1.bf16.xpose.msra.mxu0 0
        %826 = vmatprep.subr.bf16.mxu0 0
        %827 = vmatpush1.bf16.xpose.msra.mxu0 0
        %828 = vmatprep.subr.bf16.mxu0 0
        %829 = vmatpush1.bf16.xpose.msra.mxu0 0
        %830 = vmatprep.subr.bf16.mxu0 0
        %831 = vmatpush1.bf16.xpose.msra.mxu0 0
        %832 = vmatprep.subr.bf16.mxu0 0
        %833 = vmatpush1.bf16.xpose.msra.mxu0 0
        %834 = vmatprep.subr.bf16.mxu0 0
        %835 = vmatpush1.bf16.xpose.msra.mxu0 0
        %836 = vmatprep.mubr.bf16.mxu0 0
        %837 = vmatmul.mubr.bf16.gmra.mrb[0].mxu0 %v799
        %v838 = vpop.f32.mrb[0].mxu0
        %v839 = vadd.f32 %v704, %v838
        %v840 = vpop.f32.mrb[0].mxu0
        %v841 = vpop.f32.mrb[0].mxu0
        %v842 = vpop.f32.mrb[0].mxu0
        %843 = vdwg.mxu0
        %v845 = vsel %vm705, %v694, 0
        %v848 = vsel %vm705, %v698, 0
        %850 = vmatprep.subr.bf16.mxu0 0
        %851 = vmatpush1.bf16.xpose.msra.mxu0 %v848
        %852 = vmatprep.subr.bf16.mxu0 0
        %853 = vmatpush1.bf16.xpose.msra.mxu0 0
        %854 = vmatprep.subr.bf16.mxu0 0
        %855 = vmatpush1.bf16.xpose.msra.mxu0 0
        %856 = vmatprep.subr.bf16.mxu0 0
        %857 = vmatpush1.bf16.xpose.msra.mxu0 0
        %858 = vmatprep.subr.bf16.mxu0 0
        %859 = vmatpush1.bf16.xpose.msra.mxu0 0
        %860 = vmatprep.subr.bf16.mxu0 0
        %861 = vmatpush1.bf16.xpose.msra.mxu0 0
        %862 = vmatprep.subr.bf16.mxu0 0
        %863 = vmatpush1.bf16.xpose.msra.mxu0 0
        %864 = vmatprep.subr.bf16.mxu0 0
        %865 = vmatpush1.bf16.xpose.msra.mxu0 0
        %866 = vmatprep.subr.bf16.mxu0 0
        %867 = vmatpush1.bf16.xpose.msra.mxu0 0
        %868 = vmatprep.subr.bf16.mxu0 0
        %869 = vmatpush1.bf16.xpose.msra.mxu0 0
        %870 = vmatprep.subr.bf16.mxu0 0
        %871 = vmatpush1.bf16.xpose.msra.mxu0 0
        %872 = vmatprep.subr.bf16.mxu0 0
        %873 = vmatpush1.bf16.xpose.msra.mxu0 0
        %874 = vmatprep.subr.bf16.mxu0 0
        %875 = vmatpush1.bf16.xpose.msra.mxu0 0
        %876 = vmatprep.subr.bf16.mxu0 0
        %877 = vmatpush1.bf16.xpose.msra.mxu0 0
        %878 = vmatprep.subr.bf16.mxu0 0
        %879 = vmatpush1.bf16.xpose.msra.mxu0 0
        %880 = vmatprep.subr.bf16.mxu0 0
        %881 = vmatpush1.bf16.xpose.msra.mxu0 0
        %882 = vmatprep.mubr.bf16.mxu0 0
        %883 = vmatmul.mubr.bf16.gmra.mrb[0].mxu0 %v845
        %v884 = vpop.f32.mrb[0].mxu0
        %v885 = vadd.f32 %v704, %v884
        %v886 = vpop.f32.mrb[0].mxu0
        %v887 = vpop.f32.mrb[0].mxu0
        %v888 = vpop.f32.mrb[0].mxu0
        %889 = vdwg.mxu0
        %v890 = vmul.f32 %v747, 0.35355338
        %v891 = vmul.f32 %v793, 0.35355338
        %v892 = vmul.f32 %v839, 0.35355338
        %v893 = vmul.f32 %v885, 0.35355338
        %v894 = vld [vmem:[#allocation2] sm:$0xff]
        %v895 = vld [vmem:[#allocation2 + $0x8] sm:$0xff]
        %v896 = vld [vmem:[#allocation2 + $0x10] sm:$0xff]
        %v897 = vld [vmem:[#allocation2 + $0x18] sm:$0xff]
        %v898 = vsel %vm705, %v890, -inf
        %899 = vmax.xlane.f32.xlu0 %v898
        %v900 = vpop.xlane.xlu0 %899
        %v901 = vsel %vm705, %v891, -inf
        %902 = vmax.xlane.f32.xlu0 %v901
        %v903 = vpop.xlane.xlu0 %902
        %v904 = vsel %vm705, %v892, -inf
        %905 = vmax.xlane.f32.xlu0 %v904
        %v906 = vpop.xlane.xlu0 %905
        %v907 = vsel %vm705, %v893, -inf
        %908 = vmax.xlane.f32.xlu0 %v907
        %v909 = vpop.xlane.xlu0 %908
        %v910 = vmax.f32 %v894, %v900
        %v911 = vmax.f32 %v895, %v903
        %v912 = vmax.f32 %v896, %v906
        %v913 = vmax.f32 %v897, %v909
        %v914 = vsub.f32 %v894, %v910
        %v915 = vsub.f32 %v895, %v911
        %v916 = vsub.f32 %v896, %v912
        %v917 = vsub.f32 %v897, %v913
        %v918 = vmul.f32 %v914, 1.442695
        %v919 = vpow.pop %v918
        %v920 = vmul.f32 %v915, 1.442695
        %v921 = vpow.pop %v920
        %v922 = vmul.f32 %v916, 1.442695
        %v923 = vpow.pop %v922
        %v924 = vmul.f32 %v917, 1.442695
        %v925 = vpow.pop %v924
        %927 = vset.pattern.permute.xlu0 0
        %928 = vperm.xlu0 %927, %v910
        %v929 = vpop.permute.xlu0 %928
        %932 = vset.pattern.permute.xlu0 0
        %933 = vperm.xlu0 %932, %v911
        %v934 = vpop.permute.xlu0 %933
        %937 = vset.pattern.permute.xlu0 0
        %938 = vperm.xlu0 %937, %v912
        %v939 = vpop.permute.xlu0 %938
        %942 = vset.pattern.permute.xlu0 0
        %943 = vperm.xlu0 %942, %v913
        %v944 = vpop.permute.xlu0 %943
        %v946 = vsub.f32 %v890, %v929
        %v947 = vsub.f32 %v891, %v934
        %v948 = vsub.f32 %v892, %v939
        %v949 = vsub.f32 %v893, %v944
        %v950 = vmul.f32 %v946, 1.442695
        %v951 = vpow.pop %v950
        %v952 = vmul.f32 %v947, 1.442695
        %v953 = vpow.pop %v952
        %v954 = vmul.f32 %v948, 1.442695
        %v955 = vpow.pop %v954
        %v956 = vmul.f32 %v949, 1.442695
        %v957 = vpow.pop %v956
        %v958 = vld [vmem:[#allocation3] sm:$0xff]
        %v959 = vld [vmem:[#allocation3 + $0x8] sm:$0xff]
        %v960 = vld [vmem:[#allocation3 + $0x10] sm:$0xff]
        %v961 = vld [vmem:[#allocation3 + $0x18] sm:$0xff]
        %v962 = vmul.f32 %v919, %v958
        %v963 = vmul.f32 %v921, %v959
        %v964 = vmul.f32 %v923, %v960
        %v965 = vmul.f32 %v925, %v961
        %v966 = vsel %vm705, %v951, 0.0
        %967 = vadd.xlane.f32.xlu0 %v966
        %v968 = vpop.xlane.xlu0 %967
        %v969 = vsel %vm705, %v953, 0.0
        %970 = vadd.xlane.f32.xlu0 %v969
        %v971 = vpop.xlane.xlu0 %970
        %v972 = vsel %vm705, %v955, 0.0
        %973 = vadd.xlane.f32.xlu0 %v972
        %v974 = vpop.xlane.xlu0 %973
        %v975 = vsel %vm705, %v957, 0.0
        %976 = vadd.xlane.f32.xlu0 %v975
        %v977 = vpop.xlane.xlu0 %976
        %v978 = vadd.f32 %v962, %v968
        %v979 = vadd.f32 %v963, %v971
        %v980 = vadd.f32 %v964, %v974
        %v981 = vadd.f32 %v965, %v977
        %vm982 = vcmask 7168
        %983 = vst.msk [vmem:[#allocation3] sm:$0xff] %vm982, %v978
        %984 = vst.msk [vmem:[#allocation3 + $0x8] sm:$0xff] %vm982, %v979
        %985 = vst.msk [vmem:[#allocation3 + $0x10] sm:$0xff] %vm982, %v980
        %986 = vst.msk [vmem:[#allocation3 + $0x18] sm:$0xff] %vm982, %v981
        %v987 = vld [vmem:[#allocation4] sm:$0xff]
        %v988 = vld [vmem:[#allocation4 + $0x8] sm:$0xff]
        %v989 = vld [vmem:[#allocation4 + $0x10] sm:$0xff]
        %v990 = vld [vmem:[#allocation4 + $0x18] sm:$0xff]
        %992 = vset.pattern.permute.xlu0 0
        %993 = vperm.xlu0 %992, %v919
        %v994 = vpop.permute.xlu0 %993
        %997 = vset.pattern.permute.xlu0 0
        %998 = vperm.xlu0 %997, %v921
        %v999 = vpop.permute.xlu0 %998
        %1002 = vset.pattern.permute.xlu0 0
        %1003 = vperm.xlu0 %1002, %v923
        %v1004 = vpop.permute.xlu0 %1003
        %1007 = vset.pattern.permute.xlu0 0
        %1008 = vperm.xlu0 %1007, %v925
        %v1009 = vpop.permute.xlu0 %1008
        %v1011 = vmul.f32 %v994, %v987
        %v1012 = vmul.f32 %v999, %v988
        %v1013 = vmul.f32 %v1004, %v989
        %v1014 = vmul.f32 %v1009, %v990
        %v1015 = vpack.c.bf16 %v951, %v951
        %v1016 = vpack.c.bf16 %v953, %v953
        %v1017 = vpack.c.bf16 %v955, %v955
        %v1018 = vpack.c.bf16 %v957, %v957
        %v1020 = vsel %vm705, %v1015, 0
        %vm1022 = vcmask 1043456
        %v1024 = vsel %vm1022, %v699, 0
        %1026 = vmatprep.subr.bf16.mxu0 0
        %1027 = vmatpush1.bf16.msra.mxu0 %v1024
        %1028 = vmatprep.subr.bf16.mxu0 0
        %1029 = vmatpush1.bf16.msra.mxu0 0
        %1030 = vmatprep.subr.bf16.mxu0 0
        %1031 = vmatpush1.bf16.msra.mxu0 0
        %1032 = vmatprep.subr.bf16.mxu0 0
        %1033 = vmatpush1.bf16.msra.mxu0 0
        %1034 = vmatprep.subr.bf16.mxu0 0
        %1035 = vmatpush1.bf16.msra.mxu0 0
        %1036 = vmatprep.subr.bf16.mxu0 0
        %1037 = vmatpush1.bf16.msra.mxu0 0
        %1038 = vmatprep.subr.bf16.mxu0 0
        %1039 = vmatpush1.bf16.msra.mxu0 0
        %1040 = vmatprep.subr.bf16.mxu0 0
        %1041 = vmatpush1.bf16.msra.mxu0 0
        %1042 = vmatprep.subr.bf16.mxu0 0
        %1043 = vmatpush1.bf16.msra.mxu0 0
        %1044 = vmatprep.subr.bf16.mxu0 0
        %1045 = vmatpush1.bf16.msra.mxu0 0
        %1046 = vmatprep.subr.bf16.mxu0 0
        %1047 = vmatpush1.bf16.msra.mxu0 0
        %1048 = vmatprep.subr.bf16.mxu0 0
        %1049 = vmatpush1.bf16.msra.mxu0 0
        %1050 = vmatprep.subr.bf16.mxu0 0
        %1051 = vmatpush1.bf16.msra.mxu0 0
        %1052 = vmatprep.subr.bf16.mxu0 0
        %1053 = vmatpush1.bf16.msra.mxu0 0
        %1054 = vmatprep.subr.bf16.mxu0 0
        %1055 = vmatpush1.bf16.msra.mxu0 0
        %1056 = vmatprep.subr.bf16.mxu0 0
        %1057 = vmatpush1.bf16.msra.mxu0 0
        %1058 = vmatprep.mubr.bf16.mxu0 0
        %1059 = vmatmul.mubr.bf16.gmra.mrb[0].mxu0 %v1020
        %v1060 = vpop.f32.mrb[0].mxu0
        %v1061 = vadd.f32 0.0, %v1060
        %v1062 = vpop.f32.mrb[0].mxu0
        %v1063 = vpop.f32.mrb[0].mxu0
        %v1064 = vpop.f32.mrb[0].mxu0
        %1065 = vdwg.mxu0
        %v1067 = vsel %vm705, %v1016, 0
        %v1070 = vsel %vm1022, %v700, 0
        %1072 = vmatprep.subr.bf16.mxu0 0
        %1073 = vmatpush1.bf16.msra.mxu0 %v1070
        %1074 = vmatprep.subr.bf16.mxu0 0
        %1075 = vmatpush1.bf16.msra.mxu0 0
        %1076 = vmatprep.subr.bf16.mxu0 0
        %1077 = vmatpush1.bf16.msra.mxu0 0
        %1078 = vmatprep.subr.bf16.mxu0 0
        %1079 = vmatpush1.bf16.msra.mxu0 0
        %1080 = vmatprep.subr.bf16.mxu0 0
        %1081 = vmatpush1.bf16.msra.mxu0 0
        %1082 = vmatprep.subr.bf16.mxu0 0
        %1083 = vmatpush1.bf16.msra.mxu0 0
        %1084 = vmatprep.subr.bf16.mxu0 0
        %1085 = vmatpush1.bf16.msra.mxu0 0
        %1086 = vmatprep.subr.bf16.mxu0 0
        %1087 = vmatpush1.bf16.msra.mxu0 0
        %1088 = vmatprep.subr.bf16.mxu0 0
        %1089 = vmatpush1.bf16.msra.mxu0 0
        %1090 = vmatprep.subr.bf16.mxu0 0
        %1091 = vmatpush1.bf16.msra.mxu0 0
        %1092 = vmatprep.subr.bf16.mxu0 0
        %1093 = vmatpush1.bf16.msra.mxu0 0
        %1094 = vmatprep.subr.bf16.mxu0 0
        %1095 = vmatpush1.bf16.msra.mxu0 0
        %1096 = vmatprep.subr.bf16.mxu0 0
        %1097 = vmatpush1.bf16.msra.mxu0 0
        %1098 = vmatprep.subr.bf16.mxu0 0
        %1099 = vmatpush1.bf16.msra.mxu0 0
        %1100 = vmatprep.subr.bf16.mxu0 0
        %1101 = vmatpush1.bf16.msra.mxu0 0
        %1102 = vmatprep.subr.bf16.mxu0 0
        %1103 = vmatpush1.bf16.msra.mxu0 0
        %1104 = vmatprep.mubr.bf16.mxu0 0
        %1105 = vmatmul.mubr.bf16.gmra.mrb[0].mxu0 %v1067
        %v1106 = vpop.f32.mrb[0].mxu0
        %v1107 = vadd.f32 0.0, %v1106
        %v1108 = vpop.f32.mrb[0].mxu0
        %v1109 = vpop.f32.mrb[0].mxu0
        %v1110 = vpop.f32.mrb[0].mxu0
        %1111 = vdwg.mxu0
        %v1113 = vsel %vm705, %v1017, 0
        %v1116 = vsel %vm1022, %v701, 0
        %1118 = vmatprep.subr.bf16.mxu0 0
        %1119 = vmatpush1.bf16.msra.mxu0 %v1116
        %1120 = vmatprep.subr.bf16.mxu0 0
        %1121 = vmatpush1.bf16.msra.mxu0 0
        %1122 = vmatprep.subr.bf16.mxu0 0
        %1123 = vmatpush1.bf16.msra.mxu0 0
        %1124 = vmatprep.subr.bf16.mxu0 0
        %1125 = vmatpush1.bf16.msra.mxu0 0
        %1126 = vmatprep.subr.bf16.mxu0 0
        %1127 = vmatpush1.bf16.msra.mxu0 0
        %1128 = vmatprep.subr.bf16.mxu0 0
        %1129 = vmatpush1.bf16.msra.mxu0 0
        %1130 = vmatprep.subr.bf16.mxu0 0
        %1131 = vmatpush1.bf16.msra.mxu0 0
        %1132 = vmatprep.subr.bf16.mxu0 0
        %1133 = vmatpush1.bf16.msra.mxu0 0
        %1134 = vmatprep.subr.bf16.mxu0 0
        %1135 = vmatpush1.bf16.msra.mxu0 0
        %1136 = vmatprep.subr.bf16.mxu0 0
        %1137 = vmatpush1.bf16.msra.mxu0 0
        %1138 = vmatprep.subr.bf16.mxu0 0
        %1139 = vmatpush1.bf16.msra.mxu0 0
        %1140 = vmatprep.subr.bf16.mxu0 0
        %1141 = vmatpush1.bf16.msra.mxu0 0
        %1142 = vmatprep.subr.bf16.mxu0 0
        %1143 = vmatpush1.bf16.msra.mxu0 0
        %1144 = vmatprep.subr.bf16.mxu0 0
        %1145 = vmatpush1.bf16.msra.mxu0 0
        %1146 = vmatprep.subr.bf16.mxu0 0
        %1147 = vmatpush1.bf16.msra.mxu0 0
        %1148 = vmatprep.subr.bf16.mxu0 0
        %1149 = vmatpush1.bf16.msra.mxu0 0
        %1150 = vmatprep.mubr.bf16.mxu0 0
        %1151 = vmatmul.mubr.bf16.gmra.mrb[0].mxu0 %v1113
        %v1152 = vpop.f32.mrb[0].mxu0
        %v1153 = vadd.f32 0.0, %v1152
        %v1154 = vpop.f32.mrb[0].mxu0
        %v1155 = vpop.f32.mrb[0].mxu0
        %v1156 = vpop.f32.mrb[0].mxu0
        %1157 = vdwg.mxu0
        %v1159 = vsel %vm705, %v1018, 0
        %v1162 = vsel %vm1022, %v702, 0
        %1164 = vmatprep.subr.bf16.mxu0 0
        %1165 = vmatpush1.bf16.msra.mxu0 %v1162
        %1166 = vmatprep.subr.bf16.mxu0 0
        %1167 = vmatpush1.bf16.msra.mxu0 0
        %1168 = vmatprep.subr.bf16.mxu0 0
        %1169 = vmatpush1.bf16.msra.mxu0 0
        %1170 = vmatprep.subr.bf16.mxu0 0
        %1171 = vmatpush1.bf16.msra.mxu0 0
        %1172 = vmatprep.subr.bf16.mxu0 0
        %1173 = vmatpush1.bf16.msra.mxu0 0
        %1174 = vmatprep.subr.bf16.mxu0 0
        %1175 = vmatpush1.bf16.msra.mxu0 0
        %1176 = vmatprep.subr.bf16.mxu0 0
        %1177 = vmatpush1.bf16.msra.mxu0 0
        %1178 = vmatprep.subr.bf16.mxu0 0
        %1179 = vmatpush1.bf16.msra.mxu0 0
        %1180 = vmatprep.subr.bf16.mxu0 0
        %1181 = vmatpush1.bf16.msra.mxu0 0
        %1182 = vmatprep.subr.bf16.mxu0 0
        %1183 = vmatpush1.bf16.msra.mxu0 0
        %1184 = vmatprep.subr.bf16.mxu0 0
        %1185 = vmatpush1.bf16.msra.mxu0 0
        %1186 = vmatprep.subr.bf16.mxu0 0
        %1187 = vmatpush1.bf16.msra.mxu0 0
        %1188 = vmatprep.subr.bf16.mxu0 0
        %1189 = vmatpush1.bf16.msra.mxu0 0
        %1190 = vmatprep.subr.bf16.mxu0 0
        %1191 = vmatpush1.bf16.msra.mxu0 0
        %1192 = vmatprep.subr.bf16.mxu0 0
        %1193 = vmatpush1.bf16.msra.mxu0 0
        %1194 = vmatprep.subr.bf16.mxu0 0
        %1195 = vmatpush1.bf16.msra.mxu0 0
        %1196 = vmatprep.mubr.bf16.mxu0 0
        %1197 = vmatmul.mubr.bf16.gmra.mrb[0].mxu0 %v1159
        %v1198 = vpop.f32.mrb[0].mxu0
        %v1199 = vadd.f32 0.0, %v1198
        %v1200 = vpop.f32.mrb[0].mxu0
        %v1201 = vpop.f32.mrb[0].mxu0
        %v1202 = vpop.f32.mrb[0].mxu0
        %1203 = vdwg.mxu0
        %v1204 = vadd.f32 %v1011, %v1061
        %v1205 = vadd.f32 %v1012, %v1107
        %v1206 = vadd.f32 %v1013, %v1153
        %v1207 = vadd.f32 %v1014, %v1199
        %1208 = vst.msk [vmem:[#allocation4] sm:$0xff] %vm705, %v1204
        %1209 = vst.msk [vmem:[#allocation4 + $0x8] sm:$0xff] %vm705, %v1205
        %1210 = vst.msk [vmem:[#allocation4 + $0x10] sm:$0xff] %vm705, %v1206
        %1211 = vst.msk [vmem:[#allocation4 + $0x18] sm:$0xff] %vm705, %v1207
        %1212 = vst.msk [vmem:[#allocation2] sm:$0xff] %vm982, %v910
        %1213 = vst.msk [vmem:[#allocation2 + $0x8] sm:$0xff] %vm982, %v911
        %1214 = vst.msk [vmem:[#allocation2 + $0x10] sm:$0xff] %vm982, %v912
        %1215 = vst.msk [vmem:[#allocation2 + $0x18] sm:$0xff] %vm982, %v913
        // Predicated region
        $region101: #{tpu_custom_call.1} parent=79 // pred_check
          %p1216 = pneg %p673
        $region102: #{tpu_custom_call.1} parent=79 // pred_check_branch
          %1218 = sbr.rel (%p1216) target = $region104
        $region103: #{tpu_custom_call.1} parent=79 // pred_region
          %v1219 = vld [vmem:[#allocation3] sm:$0xff]
          %v1220 = vld [vmem:[#allocation3 + $0x8] sm:$0xff]
          %v1221 = vld [vmem:[#allocation3 + $0x10] sm:$0xff]
          %v1222 = vld [vmem:[#allocation3 + $0x18] sm:$0xff]
          %v1223 = vrcp.pop %v1219
          %v1224 = vrcp.pop %v1220
          %v1225 = vrcp.pop %v1221
          %v1226 = vrcp.pop %v1222
          %v1227 = vld [vmem:[#allocation4] sm:$0xff]
          %1229 = vset.pattern.permute.xlu0 0
          %1230 = vperm.xlu0 %1229, %v1223
          %v1231 = vpop.permute.xlu0 %1230
          %v1233 = vmul.f32 %v1227, %v1231
          %v1234 = vpack.c.bf16 %v1233, %v1233
          %v1235 = vld [vmem:[%s5] sm:$0xf]
          %s1236 = scalar_lea.vmem [#allocation4], 8
          %v1237 = vld [vmem:[%s1236] sm:$0xff]
          %1239 = vset.pattern.permute.xlu0 0
          %1240 = vperm.xlu0 %1239, %v1224
          %v1241 = vpop.permute.xlu0 %1240
          %v1243 = vmul.f32 %v1237, %v1241
          %v1244 = vpack.c.bf16 %v1243, %v1243
          %s1245 = scalar_lea.vmem %s5, 4
          %v1246 = vld [vmem:[%s1245] sm:$0xf]
          %v1248 = vsel %vm705, %v1244, 0
          %v1251 = vsel %vm1022, %v1246, 0
          %1253 = vmatprep.subr.bf16.mxu0 0
          %1254 = vmatpush1.bf16.msra.mxu0 %v1251
          %1255 = vmatprep.subr.bf16.mxu0 0
          %1256 = vmatpush1.bf16.msra.mxu0 0
          %1257 = vmatprep.subr.bf16.mxu0 0
          %1258 = vmatpush1.bf16.msra.mxu0 0
          %1259 = vmatprep.subr.bf16.mxu0 0
          %1260 = vmatpush1.bf16.msra.mxu0 0
          %1261 = vmatprep.subr.bf16.mxu0 0
          %1262 = vmatpush1.bf16.msra.mxu0 0
          %1263 = vmatprep.subr.bf16.mxu0 0
          %1264 = vmatpush1.bf16.msra.mxu0 0
          %1265 = vmatprep.subr.bf16.mxu0 0
          %1266 = vmatpush1.bf16.msra.mxu0 0
          %1267 = vmatprep.subr.bf16.mxu0 0
          %1268 = vmatpush1.bf16.msra.mxu0 0
          %1269 = vmatprep.subr.bf16.mxu0 0
          %1270 = vmatpush1.bf16.msra.mxu0 0
          %1271 = vmatprep.subr.bf16.mxu0 0
          %1272 = vmatpush1.bf16.msra.mxu0 0
          %1273 = vmatprep.subr.bf16.mxu0 0
          %1274 = vmatpush1.bf16.msra.mxu0 0
          %1275 = vmatprep.subr.bf16.mxu0 0
          %1276 = vmatpush1.bf16.msra.mxu0 0
          %1277 = vmatprep.subr.bf16.mxu0 0
          %1278 = vmatpush1.bf16.msra.mxu0 0
          %1279 = vmatprep.subr.bf16.mxu0 0
          %1280 = vmatpush1.bf16.msra.mxu0 0
          %1281 = vmatprep.subr.bf16.mxu0 0
          %1282 = vmatpush1.bf16.msra.mxu0 0
          %1283 = vmatprep.subr.bf16.mxu0 0
          %1284 = vmatpush1.bf16.msra.mxu0 0
          %1285 = vmatprep.mubr.bf16.mxu0 0
          %1286 = vmatmul.mubr.bf16.gmra.mrb[0].mxu0 %v1248
          %v1287 = vpop.f32.mrb[0].mxu0
          %v1288 = vadd.f32 0.0, %v1287
          %v1289 = vpop.f32.mrb[0].mxu0
          %v1290 = vpop.f32.mrb[0].mxu0
          %v1291 = vpop.f32.mrb[0].mxu0
          %1292 = vdwg.mxu0
          %v1294 = vsel %vm705, %v1234, 0
          %v1297 = vsel %vm1022, %v1235, 0
          %1299 = vmatprep.subr.bf16.mxu0 0
          %1300 = vmatpush1.bf16.msra.mxu0 %v1297
          %1301 = vmatprep.subr.bf16.mxu0 0
          %1302 = vmatpush1.bf16.msra.mxu0 0
          %1303 = vmatprep.subr.bf16.mxu0 0
          %1304 = vmatpush1.bf16.msra.mxu0 0
          %1305 = vmatprep.subr.bf16.mxu0 0
          %1306 = vmatpush1.bf16.msra.mxu0 0
          %1307 = vmatprep.subr.bf16.mxu0 0
          %1308 = vmatpush1.bf16.msra.mxu0 0
          %1309 = vmatprep.subr.bf16.mxu0 0
          %1310 = vmatpush1.bf16.msra.mxu0 0
          %1311 = vmatprep.subr.bf16.mxu0 0
          %1312 = vmatpush1.bf16.msra.mxu0 0
          %1313 = vmatprep.subr.bf16.mxu0 0
          %1314 = vmatpush1.bf16.msra.mxu0 0
          %1315 = vmatprep.subr.bf16.mxu0 0
          %1316 = vmatpush1.bf16.msra.mxu0 0
          %1317 = vmatprep.subr.bf16.mxu0 0
          %1318 = vmatpush1.bf16.msra.mxu0 0
          %1319 = vmatprep.subr.bf16.mxu0 0
          %1320 = vmatpush1.bf16.msra.mxu0 0
          %1321 = vmatprep.subr.bf16.mxu0 0
          %1322 = vmatpush1.bf16.msra.mxu0 0
          %1323 = vmatprep.subr.bf16.mxu0 0
          %1324 = vmatpush1.bf16.msra.mxu0 0
          %1325 = vmatprep.subr.bf16.mxu0 0
          %1326 = vmatpush1.bf16.msra.mxu0 0
          %1327 = vmatprep.subr.bf16.mxu0 0
          %1328 = vmatpush1.bf16.msra.mxu0 0
          %1329 = vmatprep.subr.bf16.mxu0 0
          %1330 = vmatpush1.bf16.msra.mxu0 0
          %1331 = vmatprep.mubr.bf16.mxu0 0
          %1332 = vmatmul.mubr.bf16.gmra.mrb[0].mxu0 %v1294
          %v1333 = vpop.f32.mrb[0].mxu0
          %v1334 = vadd.f32 %v1288, %v1333
          %v1335 = vpop.f32.mrb[0].mxu0
          %v1336 = vpop.f32.mrb[0].mxu0
          %v1337 = vpop.f32.mrb[0].mxu0
          %1338 = vdwg.mxu0
          %s1339 = scalar_lea.vmem [#allocation4], 16
          %v1340 = vld [vmem:[%s1339] sm:$0xff]
          %1342 = vset.pattern.permute.xlu0 0
          %1343 = vperm.xlu0 %1342, %v1225
          %v1344 = vpop.permute.xlu0 %1343
          %v1346 = vmul.f32 %v1340, %v1344
          %v1347 = vpack.c.bf16 %v1346, %v1346
          %s1348 = scalar_lea.vmem %s5, 8
          %v1349 = vld [vmem:[%s1348] sm:$0xf]
          %v1351 = vsel %vm705, %v1347, 0
          %v1354 = vsel %vm1022, %v1349, 0
          %1356 = vmatprep.subr.bf16.mxu0 0
          %1357 = vmatpush1.bf16.msra.mxu0 %v1354
          %1358 = vmatprep.subr.bf16.mxu0 0
          %1359 = vmatpush1.bf16.msra.mxu0 0
          %1360 = vmatprep.subr.bf16.mxu0 0
          %1361 = vmatpush1.bf16.msra.mxu0 0
          %1362 = vmatprep.subr.bf16.mxu0 0
          %1363 = vmatpush1.bf16.msra.mxu0 0
          %1364 = vmatprep.subr.bf16.mxu0 0
          %1365 = vmatpush1.bf16.msra.mxu0 0
          %1366 = vmatprep.subr.bf16.mxu0 0
          %1367 = vmatpush1.bf16.msra.mxu0 0
          %1368 = vmatprep.subr.bf16.mxu0 0
          %1369 = vmatpush1.bf16.msra.mxu0 0
          %1370 = vmatprep.subr.bf16.mxu0 0
          %1371 = vmatpush1.bf16.msra.mxu0 0
          %1372 = vmatprep.subr.bf16.mxu0 0
          %1373 = vmatpush1.bf16.msra.mxu0 0
          %1374 = vmatprep.subr.bf16.mxu0 0
          %1375 = vmatpush1.bf16.msra.mxu0 0
          %1376 = vmatprep.subr.bf16.mxu0 0
          %1377 = vmatpush1.bf16.msra.mxu0 0
          %1378 = vmatprep.subr.bf16.mxu0 0
          %1379 = vmatpush1.bf16.msra.mxu0 0
          %1380 = vmatprep.subr.bf16.mxu0 0
          %1381 = vmatpush1.bf16.msra.mxu0 0
          %1382 = vmatprep.subr.bf16.mxu0 0
          %1383 = vmatpush1.bf16.msra.mxu0 0
          %1384 = vmatprep.subr.bf16.mxu0 0
          %1385 = vmatpush1.bf16.msra.mxu0 0
          %1386 = vmatprep.subr.bf16.mxu0 0
          %1387 = vmatpush1.bf16.msra.mxu0 0
          %1388 = vmatprep.mubr.bf16.mxu0 0
          %1389 = vmatmul.mubr.bf16.gmra.mrb[0].mxu0 %v1351
          %v1390 = vpop.f32.mrb[0].mxu0
          %v1391 = vadd.f32 0.0, %v1390
          %v1392 = vpop.f32.mrb[0].mxu0
          %v1393 = vpop.f32.mrb[0].mxu0
          %v1394 = vpop.f32.mrb[0].mxu0
          %1395 = vdwg.mxu0
          %v1396 = vadd.f32 %v1334, %v1391
          %s1397 = scalar_lea.vmem [#allocation4], 24
          %v1398 = vld [vmem:[%s1397] sm:$0xff]
          %1400 = vset.pattern.permute.xlu0 0
          %1401 = vperm.xlu0 %1400, %v1226
          %v1402 = vpop.permute.xlu0 %1401
          %v1404 = vmul.f32 %v1398, %v1402
          %v1405 = vpack.c.bf16 %v1404, %v1404
          %s1406 = scalar_lea.vmem %s5, 12
          %v1407 = vld [vmem:[%s1406] sm:$0xf]
          %v1409 = vsel %vm705, %v1405, 0
          %v1412 = vsel %vm1022, %v1407, 0
          %1414 = vmatprep.subr.bf16.mxu0 0
          %1415 = vmatpush1.bf16.msra.mxu0 %v1412
          %1416 = vmatprep.subr.bf16.mxu0 0
          %1417 = vmatpush1.bf16.msra.mxu0 0
          %1418 = vmatprep.subr.bf16.mxu0 0
          %1419 = vmatpush1.bf16.msra.mxu0 0
          %1420 = vmatprep.subr.bf16.mxu0 0
          %1421 = vmatpush1.bf16.msra.mxu0 0
          %1422 = vmatprep.subr.bf16.mxu0 0
          %1423 = vmatpush1.bf16.msra.mxu0 0
          %1424 = vmatprep.subr.bf16.mxu0 0
          %1425 = vmatpush1.bf16.msra.mxu0 0
          %1426 = vmatprep.subr.bf16.mxu0 0
          %1427 = vmatpush1.bf16.msra.mxu0 0
          %1428 = vmatprep.subr.bf16.mxu0 0
          %1429 = vmatpush1.bf16.msra.mxu0 0
          %1430 = vmatprep.subr.bf16.mxu0 0
          %1431 = vmatpush1.bf16.msra.mxu0 0
          %1432 = vmatprep.subr.bf16.mxu0 0
          %1433 = vmatpush1.bf16.msra.mxu0 0
          %1434 = vmatprep.subr.bf16.mxu0 0
          %1435 = vmatpush1.bf16.msra.mxu0 0
          %1436 = vmatprep.subr.bf16.mxu0 0
          %1437 = vmatpush1.bf16.msra.mxu0 0
          %1438 = vmatprep.subr.bf16.mxu0 0
          %1439 = vmatpush1.bf16.msra.mxu0 0
          %1440 = vmatprep.subr.bf16.mxu0 0
          %1441 = vmatpush1.bf16.msra.mxu0 0
          %1442 = vmatprep.subr.bf16.mxu0 0
          %1443 = vmatpush1.bf16.msra.mxu0 0
          %1444 = vmatprep.subr.bf16.mxu0 0
          %1445 = vmatpush1.bf16.msra.mxu0 0
          %1446 = vmatprep.mubr.bf16.mxu0 0
          %1447 = vmatmul.mubr.bf16.gmra.mrb[0].mxu0 %v1409
          %v1448 = vpop.f32.mrb[0].mxu0
          %v1449 = vadd.f32 0.0, %v1448
          %v1450 = vpop.f32.mrb[0].mxu0
          %v1451 = vpop.f32.mrb[0].mxu0
          %v1452 = vpop.f32.mrb[0].mxu0
          %1453 = vdwg.mxu0
          %v1454 = vadd.f32 %v1396, %v1449
          %v1455 = vld [vmem:[%s6] sm:$0x1]
          %v1457 = vlaneseq
          %v1458 = vshrl.u32 %v1457, 7
          %v1459 = vsub.s32 0, %v1458
          %v1460 = vrot.slane %v1455, %v1459
          %v1462 = vadd.f32 %v1454, %v1460
          %v1463 = vld [vmem:[%s584] sm:$0xf]
          %v1464 = vunpack.c.l.bf16 %v1463
          %v1465 = vadd.f32 %v1462, %v1464
          %v1466 = vld [vmem:[%s7] sm:$0x1]
          %v1467 = vld [vmem:[#allocation11] sm:$0x1]
          %vm1468 = vcmask 261120
          %v1469 = vsel %vm1468, %v1465, 0.0
          %1470 = vadd.xlane.f32.xlu0 %v1469
          %v1471 = vpop.xlane.xlu0 %1470
          %v1472 = vrcp.pop 32.0
          %v1473 = vmul.f32 %v1471, %v1472
          %v1474 = vmul.f32 %v1465, %v1465
          %v1475 = vsel %vm1468, %v1474, 0.0
          %1476 = vadd.xlane.f32.xlu0 %v1475
          %v1477 = vpop.xlane.xlu0 %1476
          %v1478 = vmul.f32 %v1477, %v1472
          %v1479 = vmul.f32 %v1473, %v1473
          %v1480 = vsub.f32 %v1478, %v1479
          %v1481 = vmax.f32 %v1480, 0.0
          %v1482 = vsub.f32 %v1465, %v1473
          %v1483 = vadd.f32 %v1481, 1e-05
          %v1484 = vrsqrt.pop %v1483
          %v1485 = vmul.f32 %v1482, %v1484
          %v1487 = vlaneseq
          %v1488 = vshrl.u32 %v1487, 7
          %v1489 = vsub.s32 0, %v1488
          %v1490 = vrot.slane %v1466, %v1489
          %v1492 = vmul.f32 %v1485, %v1490
          %v1494 = vlaneseq
          %v1495 = vshrl.u32 %v1494, 7
          %v1496 = vsub.s32 0, %v1495
          %v1497 = vrot.slane %v1467, %v1496
          %v1499 = vadd.f32 %v1492, %v1497
          %v1500 = vpack.c.bf16 %v1499, %v1499
          %v1501 = vld [vmem:[%s9] sm:$0xf]
          %v1502 = vld [vmem:[%s9 + $0x4] sm:$0xf]
          %v1503 = vld [vmem:[%s9 + $0x8] sm:$0xf]
          %v1504 = vld [vmem:[%s9 + $0xc] sm:$0xf]
          %v1505 = vld [vmem:[%s10] sm:$0x1]
          %v1507 = vlaneseq
          %v1508 = vshrl.u32 %v1507, 7
          %v1509 = vsub.s32 0, %v1508
          %v1510 = vrot.slane %v1505, %v1509
          %v1516 = vunpack.c.l.b16 %v1501
          %v1517 = vunpack.c.l.b16 %v1502
          %v1518 = vunpack.c.l.b16 %v1503
          %v1519 = vunpack.c.l.b16 %v1504
          %v1520 = vpack.c.b16 %v1517, %v1516
          %v1521 = vpack.c.b16 %v1519, %v1518
          %v1525 = vsel %vm1468, %v1500, 0
          %1527 = vmatprep.subr.bf16.mxu0 0
          %1528 = vmatpush1.bf16.msra.mxu0 %v1520
          %1529 = vmatprep.subr.bf16.mxu0 0
          %1530 = vmatpush1.bf16.msra.mxu0 %v1521
          %1531 = vmatprep.subr.bf16.mxu0 0
          %1532 = vmatpush1.bf16.msra.mxu0 0
          %1533 = vmatprep.subr.bf16.mxu0 0
          %1534 = vmatpush1.bf16.msra.mxu0 0
          %1535 = vmatprep.subr.bf16.mxu0 0
          %1536 = vmatpush1.bf16.msra.mxu0 0
          %1537 = vmatprep.subr.bf16.mxu0 0
          %1538 = vmatpush1.bf16.msra.mxu0 0
          %1539 = vmatprep.subr.bf16.mxu0 0
          %1540 = vmatpush1.bf16.msra.mxu0 0
          %1541 = vmatprep.subr.bf16.mxu0 0
          %1542 = vmatpush1.bf16.msra.mxu0 0
          %1543 = vmatprep.subr.bf16.mxu0 0
          %1544 = vmatpush1.bf16.msra.mxu0 0
          %1545 = vmatprep.subr.bf16.mxu0 0
          %1546 = vmatpush1.bf16.msra.mxu0 0
          %1547 = vmatprep.subr.bf16.mxu0 0
          %1548 = vmatpush1.bf16.msra.mxu0 0
          %1549 = vmatprep.subr.bf16.mxu0 0
          %1550 = vmatpush1.bf16.msra.mxu0 0
          %1551 = vmatprep.subr.bf16.mxu0 0
          %1552 = vmatpush1.bf16.msra.mxu0 0
          %1553 = vmatprep.subr.bf16.mxu0 0
          %1554 = vmatpush1.bf16.msra.mxu0 0
          %1555 = vmatprep.subr.bf16.mxu0 0
          %1556 = vmatpush1.bf16.msra.mxu0 0
          %1557 = vmatprep.subr.bf16.mxu0 0
          %1558 = vmatpush1.bf16.msra.mxu0 0
          %1559 = vmatprep.mubr.bf16.mxu0 0
          %1560 = vmatmul.mubr.bf16.gmra.mrb[0].mxu0 %v1525
          %v1561 = vpop.f32.mrb[0].mxu0
          %v1562 = vadd.f32 %v1510, %v1561
          %v1563 = vpop.f32.mrb[0].mxu0
          %v1564 = vpop.f32.mrb[0].mxu0
          %v1565 = vpop.f32.mrb[0].mxu0
          %1566 = vdwg.mxu0
          %v1567 = vmax.f32 %v1562, 0.0
          %v1568 = vpack.c.bf16 %v1567, %v1567
          %v1569 = vld [vmem:[%s11] sm:$0xf]
          %v1570 = vld [vmem:[%s11 + $0x4] sm:$0xf]
          %v1571 = vld [vmem:[%s11 + $0x8] sm:$0xf]
          %v1572 = vld [vmem:[%s11 + $0xc] sm:$0xf]
          %v1573 = vld [vmem:[%s11 + $0x10] sm:$0xf]
          %v1574 = vld [vmem:[%s11 + $0x14] sm:$0xf]
          %v1575 = vld [vmem:[%s11 + $0x18] sm:$0xf]
          %v1576 = vld [vmem:[%s11 + $0x1c] sm:$0xf]
          %v1577 = vld [vmem:[%s11 + $0x20] sm:$0xf]
          %v1578 = vld [vmem:[%s11 + $0x24] sm:$0xf]
          %v1579 = vld [vmem:[%s11 + $0x28] sm:$0xf]
          %v1580 = vld [vmem:[%s11 + $0x2c] sm:$0xf]
          %v1581 = vld [vmem:[%s11 + $0x30] sm:$0xf]
          %v1582 = vld [vmem:[%s11 + $0x34] sm:$0xf]
          %v1583 = vld [vmem:[%s11 + $0x38] sm:$0xf]
          %v1584 = vld [vmem:[%s11 + $0x3c] sm:$0xf]
          %v1585 = vld [vmem:[%s12] sm:$0x1]
          %v1587 = vlaneseq
          %v1588 = vshrl.u32 %v1587, 7
          %v1589 = vsub.s32 0, %v1588
          %v1590 = vrot.slane %v1585, %v1589
          %v1608 = vunpack.c.l.b16 %v1569
          %v1609 = vunpack.c.l.b16 %v1570
          %v1610 = vunpack.c.l.b16 %v1571
          %v1611 = vunpack.c.l.b16 %v1572
          %v1612 = vunpack.c.l.b16 %v1573
          %v1613 = vunpack.c.l.b16 %v1574
          %v1614 = vunpack.c.l.b16 %v1575
          %v1615 = vunpack.c.l.b16 %v1576
          %v1616 = vunpack.c.l.b16 %v1577
          %v1617 = vunpack.c.l.b16 %v1578
          %v1618 = vunpack.c.l.b16 %v1579
          %v1619 = vunpack.c.l.b16 %v1580
          %v1620 = vunpack.c.l.b16 %v1581
          %v1621 = vunpack.c.l.b16 %v1582
          %v1622 = vunpack.c.l.b16 %v1583
          %v1623 = vunpack.c.l.b16 %v1584
          %v1624 = vpack.c.b16 %v1609, %v1608
          %v1625 = vpack.c.b16 %v1611, %v1610
          %v1626 = vpack.c.b16 %v1613, %v1612
          %v1627 = vpack.c.b16 %v1615, %v1614
          %v1628 = vpack.c.b16 %v1617, %v1616
          %v1629 = vpack.c.b16 %v1619, %v1618
          %v1630 = vpack.c.b16 %v1621, %v1620
          %v1631 = vpack.c.b16 %v1623, %v1622
          %1640 = vmatprep.subr.bf16.mxu0 0
          %1641 = vmatpush1.bf16.msra.mxu0 %v1624
          %1642 = vmatprep.subr.bf16.mxu0 0
          %1643 = vmatpush1.bf16.msra.mxu0 %v1625
          %1644 = vmatprep.subr.bf16.mxu0 0
          %1645 = vmatpush1.bf16.msra.mxu0 %v1626
          %1646 = vmatprep.subr.bf16.mxu0 0
          %1647 = vmatpush1.bf16.msra.mxu0 %v1627
          %1648 = vmatprep.subr.bf16.mxu0 0
          %1649 = vmatpush1.bf16.msra.mxu0 %v1628
          %1650 = vmatprep.subr.bf16.mxu0 0
          %1651 = vmatpush1.bf16.msra.mxu0 %v1629
          %1652 = vmatprep.subr.bf16.mxu0 0
          %1653 = vmatpush1.bf16.msra.mxu0 %v1630
          %1654 = vmatprep.subr.bf16.mxu0 0
          %1655 = vmatpush1.bf16.msra.mxu0 %v1631
          %1656 = vmatprep.subr.bf16.mxu0 0
          %1657 = vmatpush1.bf16.msra.mxu0 0
          %1658 = vmatprep.subr.bf16.mxu0 0
          %1659 = vmatpush1.bf16.msra.mxu0 0
          %1660 = vmatprep.subr.bf16.mxu0 0
          %1661 = vmatpush1.bf16.msra.mxu0 0
          %1662 = vmatprep.subr.bf16.mxu0 0
          %1663 = vmatpush1.bf16.msra.mxu0 0
          %1664 = vmatprep.subr.bf16.mxu0 0
          %1665 = vmatpush1.bf16.msra.mxu0 0
          %1666 = vmatprep.subr.bf16.mxu0 0
          %1667 = vmatpush1.bf16.msra.mxu0 0
          %1668 = vmatprep.subr.bf16.mxu0 0
          %1669 = vmatpush1.bf16.msra.mxu0 0
          %1670 = vmatprep.subr.bf16.mxu0 0
          %1671 = vmatpush1.bf16.msra.mxu0 0
          %1672 = vmatprep.mubr.bf16.mxu0 0
          %1673 = vmatmul.mubr.bf16.gmra.mrb[0].mxu0 %v1568
          %v1674 = vpop.f32.mrb[0].mxu0
          %v1675 = vadd.f32 %v1590, %v1674
          %v1676 = vpop.f32.mrb[0].mxu0
          %v1677 = vpop.f32.mrb[0].mxu0
          %v1678 = vpop.f32.mrb[0].mxu0
          %1679 = vdwg.mxu0
          %v1680 = vadd.f32 %v1675, %v1499
          %v1681 = vld [vmem:[%s13] sm:$0x1]
          %v1682 = vld [vmem:[%s14] sm:$0x1]
          %v1683 = vsel %vm1468, %v1680, 0.0
          %1684 = vadd.xlane.f32.xlu0 %v1683
          %v1685 = vpop.xlane.xlu0 %1684
          %v1686 = vmul.f32 %v1685, %v1472
          %v1687 = vmul.f32 %v1680, %v1680
          %v1688 = vsel %vm1468, %v1687, 0.0
          %1689 = vadd.xlane.f32.xlu0 %v1688
          %v1690 = vpop.xlane.xlu0 %1689
          %v1691 = vmul.f32 %v1690, %v1472
          %v1692 = vmul.f32 %v1686, %v1686
          %v1693 = vsub.f32 %v1691, %v1692
          %v1694 = vmax.f32 %v1693, 0.0
          %v1695 = vsub.f32 %v1680, %v1686
          %v1696 = vadd.f32 %v1694, 1e-05
          %v1697 = vrsqrt.pop %v1696
          %v1698 = vmul.f32 %v1695, %v1697
          %v1700 = vlaneseq
          %v1701 = vshrl.u32 %v1700, 7
          %v1702 = vsub.s32 0, %v1701
          %v1703 = vrot.slane %v1681, %v1702
          %v1705 = vmul.f32 %v1698, %v1703
          %v1707 = vlaneseq
          %v1708 = vshrl.u32 %v1707, 7
          %v1709 = vsub.s32 0, %v1708
          %v1710 = vrot.slane %v1682, %v1709
          %v1712 = vadd.f32 %v1705, %v1710
          %1713 = vst.msk [vmem:[%s655] sm:$0xff] %vm1468, %v1712
        $region104: #{tpu_custom_call.1} parent=79 // pred_fallthru
          _
        %s1714 = sand.u32 %s413, 1
        %s1715 = scalar_lea.sflag [#allocation7], %s1714
        %s1716 = sand.u32 %s413, 1
        %s1717 = smul.addr %s1716, 8
        %s1718 = scalar_lea.vmem [#allocation13], %s1717
        // Predicated region
        $region105: #{tpu_custom_call.1} parent=79 // pred_check
          %p1719 = pneg %p423
        $region106: #{tpu_custom_call.1} parent=79 // pred_check_branch
          %1721 = sbr.rel (%p1719) target = $region108
        $region107: #{tpu_custom_call.1} parent=79 // pred_region
          %s1723 = ssub.s32 128, 128
          %1724 = vsyncadd %s1715, %s1723
          %s1725 = sadd.s32 %s40, %s39
          %s1726 = smul.addr %s1725, 128
          %s1727 = scalar_lea.hbm %s15, %s1726
          %s1729 = sshll.u32 %s1718, 4
          %s1730 = int_to_ptr.vmem [resolvable:$true] %s1729
          %1732 = dma.vmem_to_hbm [thread:$0]  %s1730, 128, %s1727, %s1715
        $region108: #{tpu_custom_call.1} parent=79 // pred_fallthru
          _
      $region80: #{tpu_custom_call.1} parent=5 // pred_fallthru
        _
      %p1733 = scmp.le.s32.totalorder 2, %s29
      // Predicated region
      $region109: #{tpu_custom_call.1} parent=5 // pred_check
        %p1734 = pneg %p1733
      $region110: #{tpu_custom_call.1} parent=5 // pred_check_branch
        %1736 = sbr.rel (%p1734) target = $region112
      $region111: #{tpu_custom_call.1} parent=5 // pred_region
        %s1737 = ssub.s32 %s29, 2
        // Predicated region
        $region113: #{tpu_custom_call.1} parent=111 // pred_check
          %p1738 = pneg %p429
        $region114: #{tpu_custom_call.1} parent=111 // pred_check_branch
          %1740 = sbr.rel (%p1738) target = $region116
        $region115: #{tpu_custom_call.1} parent=111 // pred_region
          %s1741 = sand.u32 %s414, 1
          %s1742 = scalar_lea.sflag [#allocation7], %s1741
          %s1743 = sand.u32 %s414, 1
          %s1744 = smul.addr %s1743, 8
          %s1745 = scalar_lea.vmem [#allocation13], %s1744
          %1746 = dma.done %s1742, 128
        $region116: #{tpu_custom_call.1} parent=111 // pred_fallthru
          _
      $region112: #{tpu_custom_call.1} parent=5 // pred_fallthru
        _
    $region6: #{tpu_custom_call.1} parent=1 // loop_footer
      %s33 = sadd.s32 1, %s29
    $region7: #{tpu_custom_call.1} parent=1 // loop_footer_branch
      %28 = sbr.rel target = $region3
    $region8: #{tpu_custom_call.1} parent=1 // loop_exit
      _
    %1747 = vsyncpa [#allocation6], 1
    %s1748 = scalar_lea.sflag [#allocation6], 1
    %1749 = vsyncpa %s1748, 1
    %1750 = vsyncpa [#allocation9], 1
    %s1751 = scalar_lea.sflag [#allocation9], 1
    %1752 = vsyncpa %s1751, 1
    %1753 = vsyncpa [#allocation12], 1
    %1754 = vsyncpa [#allocation7], 1
    %s1755 = scalar_lea.sflag [#allocation7], 1
    %1756 = vsyncpa %s1755, 1

</llo_original>
